<compile_context>
chip_gen: v7x
topology: tpu7x:2x2x1
jax: 0.10.0
libtpu: 0.0.40
codegen_flags: <defaults>
</compile_context>

<pallas_src>
import functools

import jax
import jax.numpy as jnp
from jax import lax
from jax.experimental import pallas as pl
from jax.experimental.pallas import tpu as pltpu


def _round_up(x: int, m: int) -> int:
    return ((x + m - 1) // m) * m


def _pad_to(x, target_shape):
    pads = [(0, t - s) for s, t in zip(x.shape, target_shape)]
    if any(p for _, p in pads):
        x = jnp.pad(x, pads)
    return x


def _physical_vmem_bytes() -> int:
    try:
        return int(pltpu.get_tpu_info().vmem_capacity_bytes)
    except Exception:
        return 64 << 20  # conservative fallback (v7x per-TC VMEM)


def _decoder_kernel(tgt_ref, mem_ref, pos_ref,
                    wq_ref, wk_ref, wv_ref, wo_ref,
                    gamma_ref, beta_ref,
                    out_ref,
                    k_ref, v_ref,
                    *, num_layers: int, nm_valid: int, d_valid: int,
                    eps: float = 1e-5):
    """One (batch, Nt-tile) step: cross-attn x num_layers + residual + LN."""
    cdt = jnp.bfloat16  # MXU operand dtype

    # K / V are layer- and Nt-tile-invariant: compute once per batch element.
    # Inner grid axis (Nt tiles) is "arbitrary", scratch persists across it.
    @pl.when(pl.program_id(1) == 0)
    def _():
        m_in = mem_ref[0]                                         # (Nmp, Dp) bf16
        k_ref[...] = jnp.dot(m_in, wk_ref[...],
                             preferred_element_type=jnp.float32).astype(cdt)
        v_ref[...] = jnp.dot(m_in, wv_ref[...],
                             preferred_element_type=jnp.float32).astype(cdt)

    x = tgt_ref[0].astype(jnp.float32)                            # (T, Dp)
    pos = pos_ref[0].astype(jnp.float32)
    wq = wq_ref[...]                                              # bf16 already
    wo = wo_ref[...]
    k = k_ref[...]
    v = v_ref[...]

    nmp = k.shape[0]
    dp = x.shape[-1]
    scale = 1.0 / float(d_valid) ** 0.5

    key_mask = None
    if nm_valid < nmp:  # mask padded key rows (static decision)
        key_mask = lax.broadcasted_iota(jnp.int32, (1, nmp), 1) < nm_valid

    def layer_body(_, x):
        q = jnp.dot((x + pos).astype(cdt), wq,
                    preferred_element_type=jnp.float32)           # (T, Dp)
        # scores: contract feature dim of q and k (no explicit k transpose)
        s = lax.dot_general(q.astype(cdt), k,
                            dimension_numbers=(((1,), (1,)), ((), ())),
                            preferred_element_type=jnp.float32) * scale
        if key_mask is not None:
            s = jnp.where(key_mask, s, -1e30)
        s = s - jnp.max(s, axis=-1, keepdims=True)
        p = jnp.exp(s)
        p = p * pl.reciprocal(jnp.sum(p, axis=-1, keepdims=True), approx=True)
        ctx = jnp.dot(p.astype(cdt), v, preferred_element_type=jnp.float32)
        attn = jnp.dot(ctx.astype(cdt), wo, preferred_element_type=jnp.float32)
        return attn + x                                           # residual

    x = lax.fori_loop(0, num_layers, layer_body, x,
                      unroll=bool(num_layers <= 4))

    # Final LayerNorm over the *true* feature width d_valid (padded cols of x
    # are identically zero by construction; padded rows rely on eps > 0).
    mu = jnp.sum(x, axis=-1, keepdims=True) * (1.0 / float(d_valid))
    diff = x - mu
    if d_valid < dp:
        fmask = lax.broadcasted_iota(jnp.int32, (1, dp), 1) < d_valid
        diff = jnp.where(fmask, diff, 0.0)
    var = jnp.sum(diff * diff, axis=-1, keepdims=True) * (1.0 / float(d_valid))
    y = diff * lax.rsqrt(var + eps) * gamma_ref[...].astype(jnp.float32) \
        + beta_ref[...].astype(jnp.float32)

    out_ref[0] = y.astype(out_ref.dtype)


def decoder_forward(tgt, memory, pos, query_pos, params, *, num_layers,
                    max_tile_nt=256, compute_dtype=jnp.bfloat16, eps=1e-5):
    """Pallas Decoder forward. Returns (1, B, Nt, D) = output.unsqueeze(0)."""
    B, Nt, D = tgt.shape
    _, Nm, _ = memory.shape
    wq, wk, wv, wo, gamma, beta = params
    out_dtype = tgt.dtype
    c = compute_dtype

    # Lane-dense / sublane-aligned padded extents.
    Dp = _round_up(D, 128)
    Nmp = _round_up(Nm, 128)
    if Nt >= 128:
        # Fill MXU passes (2x256^2 on v6e/v7x): query tile a multiple of 128.
        tile_nt = min(max_tile_nt, _round_up(min(Nt, max_tile_nt), 128))
    else:
        tile_nt = _round_up(Nt, 8)
    Ntp = _round_up(Nt, tile_nt)
    n_nt = Ntp // tile_nt

    # Pre-add memory + query_pos in the wrapper: one HBM read instead of two
    # and no f32 (Nmp, Dp) temporaries inside the kernel.
    m_in = (memory.astype(jnp.float32) + query_pos.astype(jnp.float32)).astype(c)

    tgt_p = _pad_to(tgt.astype(c), (B, Ntp, Dp))
    pos_p = _pad_to(pos.astype(c), (B, Ntp, Dp))
    mem_p = _pad_to(m_in, (B, Nmp, Dp))
    wq_p = _pad_to(wq.astype(c), (Dp, Dp))
    wk_p = _pad_to(wk.astype(c), (Dp, Dp))
    wv_p = _pad_to(wv.astype(c), (Dp, Dp))
    wo_p = _pad_to(wo.astype(c), (Dp, Dp))
    gamma_p = _pad_to(gamma.astype(jnp.float32).reshape(1, D), (1, Dp))
    beta_p = _pad_to(beta.astype(jnp.float32).reshape(1, D), (1, Dp))

    kernel = functools.partial(_decoder_kernel, num_layers=num_layers,
                               nm_valid=Nm, d_valid=D, eps=eps)

    # VMEM budget: double-buffered activation blocks, single-buffered weights,
    # K/V scratch and the f32 intermediates, clamped to ~85% of physical VMEM.
    bf = jnp.dtype(c).itemsize
    o_sz = jnp.dtype(out_dtype).itemsize
    blk_q = tile_nt * Dp
    blk_kv = Nmp * Dp
    io_bytes = (2 * 2 * blk_q * bf          # tgt + pos (double-buffered)
                + 2 * blk_kv * bf           # m_in (double-buffered)
                + 2 * blk_q * o_sz          # output (double-buffered)
                + 4 * Dp * Dp * bf          # weights (single-buffered)
                + 2 * Dp * 4)               # gamma / beta
    scratch_bytes = 2 * blk_kv * bf         # K, V caches
    interm_bytes = (6 * blk_q * 4           # x, pos32, q, ctx, attn, LN temps
                    + 3 * tile_nt * Nmp * 4  # live score-tensor copies
                    + 2 * blk_kv * 4)        # K/V f32 results before bf16 cast
    vmem_need = io_bytes + scratch_bytes + interm_bytes + (4 << 20)
    vmem_cap = int(_physical_vmem_bytes() * 0.85)
    vmem_limit = int(min(vmem_cap, max(32 << 20, vmem_need)))

    steps = B * n_nt
    kv_flops = B * (2 * 2 * Nmp * Dp * Dp)                         # K, V proj
    layer_flops = steps * num_layers * (2 * 2 * tile_nt * Dp * Dp  # Q, O proj
                                        + 2 * 2 * tile_nt * Nmp * Dp)  # S, ctx
    cost = pl.CostEstimate(
        flops=int(kv_flops + layer_flops),
        transcendentals=int(steps * num_layers * tile_nt * Nmp),
        bytes_accessed=int((tgt_p.size + pos_p.size + mem_p.size
                            + 4 * Dp * Dp) * bf
                           + 2 * Dp * 4
                           + B * Ntp * Dp * o_sz),
    )

    w_spec = pl.BlockSpec((Dp, Dp), lambda b, i: (0, 0),
                          pipeline_mode=pl.Buffered(1))
    ln_spec = pl.BlockSpec((1, Dp), lambda b, i: (0, 0),
                           pipeline_mode=pl.Buffered(1))

    out = pl.pallas_call(
        kernel,
        out_shape=jax.ShapeDtypeStruct((B, Ntp, Dp), out_dtype),
        grid=(B, n_nt),
        in_specs=[
            pl.BlockSpec((1, tile_nt, Dp), lambda b, i: (b, i, 0)),  # tgt
            pl.BlockSpec((1, Nmp, Dp), lambda b, i: (b, 0, 0)),      # mem+qpos
            pl.BlockSpec((1, tile_nt, Dp), lambda b, i: (b, i, 0)),  # pos
            w_spec, w_spec, w_spec, w_spec,                          # Wq Wk Wv Wo
            ln_spec, ln_spec,                                        # gamma, beta
        ],
        out_specs=pl.BlockSpec((1, tile_nt, Dp), lambda b, i: (b, i, 0)),
        scratch_shapes=[pltpu.VMEM((Nmp, Dp), c),                    # K cache
                        pltpu.VMEM((Nmp, Dp), c)],                   # V cache
        compiler_params=pltpu.CompilerParams(
            dimension_semantics=("parallel", "arbitrary"),
            vmem_limit_bytes=vmem_limit),
        cost_estimate=cost,
    )(tgt_p, mem_p, pos_p, wq_p, wk_p, wv_p, wo_p, gamma_p, beta_p)

    return out[:, :Nt, :D][None]  # unsqueeze(0)


def decoder_reference(tgt, memory, pos, query_pos, params, *, num_layers,
                      eps=1e-5, compute_dtype=jnp.bfloat16):
    """Pure-JAX reference mirroring the kernel's bf16-matmul / f32-accum math."""
    wq, wk, wv, wo, gamma, beta = params
    c = compute_dtype
    wq, wk, wv, wo = (w.astype(c) for w in (wq, wk, wv, wo))
    x = tgt.astype(c).astype(jnp.float32)
    pos32 = pos.astype(c).astype(jnp.float32)
    m_in = (memory.astype(jnp.float32) + query_pos.astype(jnp.float32)).astype(c)
    k = jnp.einsum("bmd,de->bme", m_in, wk,
                   preferred_element_type=jnp.float32).astype(c)
    v = jnp.einsum("bmd,de->bme", m_in, wv,
                   preferred_element_type=jnp.float32).astype(c)
    D = tgt.shape[-1]
    scale = 1.0 / float(D) ** 0.5
    for _ in range(num_layers):
        q = jnp.einsum("btd,de->bte", (x + pos32).astype(c), wq,
                       preferred_element_type=jnp.float32)
        s = jnp.einsum("btd,bmd->btm", q.astype(c), k,
                       preferred_element_type=jnp.float32) * scale
        p = jax.nn.softmax(s, axis=-1)
        ctx = jnp.einsum("btm,bmd->btd", p.astype(c), v,
                         preferred_element_type=jnp.float32)
        attn = jnp.einsum("btd,de->bte", ctx.astype(c), wo,
                          preferred_element_type=jnp.float32)
        x = attn + x
    mu = x.mean(-1, keepdims=True)
    var = ((x - mu) ** 2).mean(-1, keepdims=True)
    y = (x - mu) * lax.rsqrt(var + eps) * gamma.astype(jnp.float32) \
        + beta.astype(jnp.float32)
    return y[None].astype(tgt.dtype)


if __name__ == "__main__":
    # Small but lane-dense demo shapes (D, Nm multiples of 128; Nt multiple of 8).
    B, Nt, Nm, D = 2, 16, 128, 128
    NUM_LAYERS = 2

    key = jax.random.PRNGKey(0)
    k_tgt, k_mem, k_pos, k_qpos, k_wq, k_wk, k_wv, k_wo = jax.random.split(key, 8)

    tgt = jax.random.normal(k_tgt, (B, Nt, D), dtype=jnp.float32)
    memory = jax.random.normal(k_mem, (B, Nm, D), dtype=jnp.float32)
    pos = 0.1 * jax.random.normal(k_pos, (B, Nt, D), dtype=jnp.float32)
    query_pos = 0.1 * jax.random.normal(k_qpos, (B, Nm, D), dtype=jnp.float32)

    # Single weight set (torch deep-copies -> all layers identical).
    wscale = 1.0 / jnp.sqrt(jnp.float32(D))
    wq = wscale * jax.random.normal(k_wq, (D, D), dtype=jnp.float32)
    wk = wscale * jax.random.normal(k_wk, (D, D), dtype=jnp.float32)
    wv = wscale * jax.random.normal(k_wv, (D, D), dtype=jnp.float32)
    wo = wscale * jax.random.normal(k_wo, (D, D), dtype=jnp.float32)
    gamma = jnp.ones((1, D), dtype=jnp.float32)   # LayerNorm weight
    beta = jnp.zeros((1, D), dtype=jnp.float32)   # LayerNorm bias
    params = (wq, wk, wv, wo, gamma, beta)

    out = decoder_forward(tgt, memory, pos, query_pos, params,
                          num_layers=NUM_LAYERS)
    out = jax.block_until_ready(out)

    ref = decoder_reference(tgt, memory, pos, query_pos, params,
                            num_layers=NUM_LAYERS)

    assert out.shape == (1, B, Nt, D), out.shape
    max_err = float(jnp.max(jnp.abs(out.astype(jnp.float32)
                                    - ref.astype(jnp.float32))))
    assert jnp.allclose(out, ref, rtol=3e-2, atol=3e-2), \
        f"mismatch vs reference, max_err={max_err}"

    print("KERNEL_OK")
</pallas_src>

<mosaic_0001>
module attributes {stable_mosaic.version = 11 : i64} {
  func.func @_decoder_kernel(%arg0: i32, %arg1: i32, %arg2: memref<1x16x128xbf16, #tpu.memory_space<vmem>>, %arg3: memref<1x128x128xbf16, #tpu.memory_space<vmem>>, %arg4: memref<1x16x128xbf16, #tpu.memory_space<vmem>>, %arg5: memref<128x128xbf16, #tpu.memory_space<vmem>>, %arg6: memref<128x128xbf16, #tpu.memory_space<vmem>>, %arg7: memref<128x128xbf16, #tpu.memory_space<vmem>>, %arg8: memref<128x128xbf16, #tpu.memory_space<vmem>>, %arg9: memref<1x128xf32, #tpu.memory_space<vmem>>, %arg10: memref<1x128xf32, #tpu.memory_space<vmem>>, %arg11: memref<1x16x128xf32, #tpu.memory_space<vmem>>, %arg12: memref<128x128xbf16, #tpu.memory_space<vmem>>, %arg13: memref<128x128xbf16, #tpu.memory_space<vmem>>) attributes {dimension_semantics = [#tpu.dimension_semantics<parallel>, #tpu.dimension_semantics<arbitrary>], iteration_bounds = array<i64: 2, 1>, scalar_prefetch = 0 : i64, scratch_operands = 2 : i64, tpu.core_type = #tpu.core_type<tc>, window_params = [{transform_indices = @transform_0, window_bounds = array<i64: 1, 16, 128>}, {transform_indices = @transform_1, window_bounds = array<i64: 1, 128, 128>}, {transform_indices = @transform_2, window_bounds = array<i64: 1, 16, 128>}, {pipeline_mode = #tpu.pipeline_mode<synchronous>, transform_indices = @transform_3, window_bounds = array<i64: 128, 128>}, {pipeline_mode = #tpu.pipeline_mode<synchronous>, transform_indices = @transform_4, window_bounds = array<i64: 128, 128>}, {pipeline_mode = #tpu.pipeline_mode<synchronous>, transform_indices = @transform_5, window_bounds = array<i64: 128, 128>}, {pipeline_mode = #tpu.pipeline_mode<synchronous>, transform_indices = @transform_6, window_bounds = array<i64: 128, 128>}, {pipeline_mode = #tpu.pipeline_mode<synchronous>, transform_indices = @transform_7, window_bounds = array<i64: 1, 128>}, {pipeline_mode = #tpu.pipeline_mode<synchronous>, transform_indices = @transform_8, window_bounds = array<i64: 1, 128>}, {transform_indices = @transform_9, window_bounds = array<i64: 1, 16, 128>}]} {
    %c0_i32 = arith.constant 0 : i32
    %0 = arith.cmpi eq, %arg1, %c0_i32 : i32
    %1 = arith.extui %0 : i1 to i32
    %c0_i32_0 = arith.constant 0 : i32
    %2 = arith.cmpi ne, %1, %c0_i32_0 : i32
    scf.if %2 {
      %c0_40 = arith.constant 0 : index
      %c0_41 = arith.constant 0 : index
      %c0_42 = arith.constant 0 : index
      %82 = vector.load %arg3[%c0_40, %c0_41, %c0_42] : memref<1x128x128xbf16, #tpu.memory_space<vmem>>, vector<1x128x128xbf16>
      %83 = vector.shape_cast %82 : vector<1x128x128xbf16> to vector<128x128xbf16>
      %c0_43 = arith.constant 0 : index
      %c0_44 = arith.constant 0 : index
      %84 = vector.load %arg6[%c0_43, %c0_44] : memref<128x128xbf16, #tpu.memory_space<vmem>>, vector<128x128xbf16>
      %cst_45 = arith.constant dense<0.000000e+00> : vector<128x128xf32>
      %85 = tpu.matmul %83, %84, %cst_45 {dimension_numbers = #tpu.dot_dimension_numbers<[1], [0], [0], [1], [0, 0, 1, 1], [], []>} : vector<128x128xbf16>, vector<128x128xbf16>, vector<128x128xf32> -> vector<128x128xf32>
      %86 = arith.truncf %85 : vector<128x128xf32> to vector<128x128xbf16>
      %c0_46 = arith.constant 0 : index
      %c0_47 = arith.constant 0 : index
      %87 = vector.load %arg12[%c0_46, %c0_47] : memref<128x128xbf16, #tpu.memory_space<vmem>>, vector<128x128xbf16>
      tpu.vector_store %arg12[%c0_46, %c0_47], %86 {strides = array<i32>} : memref<128x128xbf16, #tpu.memory_space<vmem>>, vector<128x128xbf16>,
      %c0_48 = arith.constant 0 : index
      %c0_49 = arith.constant 0 : index
      %88 = vector.load %arg7[%c0_48, %c0_49] : memref<128x128xbf16, #tpu.memory_space<vmem>>, vector<128x128xbf16>
      %cst_50 = arith.constant dense<0.000000e+00> : vector<128x128xf32>
      %89 = tpu.matmul %83, %88, %cst_50 {dimension_numbers = #tpu.dot_dimension_numbers<[1], [0], [0], [1], [0, 0, 1, 1], [], []>} : vector<128x128xbf16>, vector<128x128xbf16>, vector<128x128xf32> -> vector<128x128xf32>
      %90 = arith.truncf %89 : vector<128x128xf32> to vector<128x128xbf16>
      %c0_51 = arith.constant 0 : index
      %c0_52 = arith.constant 0 : index
      %91 = vector.load %arg13[%c0_51, %c0_52] : memref<128x128xbf16, #tpu.memory_space<vmem>>, vector<128x128xbf16>
      tpu.vector_store %arg13[%c0_51, %c0_52], %90 {strides = array<i32>} : memref<128x128xbf16, #tpu.memory_space<vmem>>, vector<128x128xbf16>,
    } else {
    }
    %c0 = arith.constant 0 : index
    %c0_1 = arith.constant 0 : index
    %c0_2 = arith.constant 0 : index
    %3 = vector.load %arg2[%c0, %c0_1, %c0_2] : memref<1x16x128xbf16, #tpu.memory_space<vmem>>, vector<1x16x128xbf16>
    %4 = vector.shape_cast %3 : vector<1x16x128xbf16> to vector<16x128xbf16>
    %5 = arith.extf %4 : vector<16x128xbf16> to vector<16x128xf32>
    %c0_3 = arith.constant 0 : index
    %c0_4 = arith.constant 0 : index
    %c0_5 = arith.constant 0 : index
    %6 = vector.load %arg4[%c0_3, %c0_4, %c0_5] : memref<1x16x128xbf16, #tpu.memory_space<vmem>>, vector<1x16x128xbf16>
    %7 = vector.shape_cast %6 : vector<1x16x128xbf16> to vector<16x128xbf16>
    %8 = arith.extf %7 : vector<16x128xbf16> to vector<16x128xf32>
    %c0_6 = arith.constant 0 : index
    %c0_7 = arith.constant 0 : index
    %9 = vector.load %arg5[%c0_6, %c0_7] : memref<128x128xbf16, #tpu.memory_space<vmem>>, vector<128x128xbf16>
    %c0_8 = arith.constant 0 : index
    %c0_9 = arith.constant 0 : index
    %10 = vector.load %arg8[%c0_8, %c0_9] : memref<128x128xbf16, #tpu.memory_space<vmem>>, vector<128x128xbf16>
    %c0_10 = arith.constant 0 : index
    %c0_11 = arith.constant 0 : index
    %11 = vector.load %arg12[%c0_10, %c0_11] : memref<128x128xbf16, #tpu.memory_space<vmem>>, vector<128x128xbf16>
    %c0_12 = arith.constant 0 : index
    %c0_13 = arith.constant 0 : index
    %12 = vector.load %arg13[%c0_12, %c0_13] : memref<128x128xbf16, #tpu.memory_space<vmem>>, vector<128x128xbf16>
    %c0_i32_14 = arith.constant 0 : i32
    %13 = arith.addf %5, %8 : vector<16x128xf32>
    %14 = arith.truncf %13 : vector<16x128xf32> to vector<16x128xbf16>
    %cst = arith.constant dense<0.000000e+00> : vector<16x128xf32>
    %15 = tpu.matmul %14, %9, %cst {dimension_numbers = #tpu.dot_dimension_numbers<[1], [0], [0], [1], [0, 0, 1, 1], [], []>} : vector<16x128xbf16>, vector<128x128xbf16>, vector<16x128xf32> -> vector<16x128xf32>
    %16 = arith.truncf %15 : vector<16x128xf32> to vector<16x128xbf16>
    %cst_15 = arith.constant dense<0.000000e+00> : vector<16x128xf32>
    %17 = tpu.matmul %16, %11, %cst_15 {dimension_numbers = #tpu.dot_dimension_numbers<[1], [1], [0], [0], [0, 0, 1, 0], [], []>} : vector<16x128xbf16>, vector<128x128xbf16>, vector<16x128xf32> -> vector<16x128xf32>
    %cst_16 = arith.constant 0.0883883461 : f32
    %18 = vector.broadcast %cst_16 : f32 to vector<16x128xf32>
    %19 = arith.mulf %17, %18 : vector<16x128xf32>
    %cst_17 = arith.constant dense<0xFF800000> : vector<16xf32>
    %20 = vector.multi_reduction <maximumf>, %19, %cst_17 [1] : vector<16x128xf32> to vector<16xf32>
    %21 = vector.shape_cast %20 : vector<16xf32> to vector<16x1xf32>
    %22 = vector.broadcast %21 : vector<16x1xf32> to vector<16x128xf32>
    %23 = arith.subf %19, %22 : vector<16x128xf32>
    %24 = math.exp %23 : vector<16x128xf32>
    %cst_18 = arith.constant dense<0.000000e+00> : vector<16xf32>
    %25 = vector.multi_reduction <add>, %24, %cst_18 [1] : vector<16x128xf32> to vector<16xf32>
    %26 = vector.shape_cast %25 : vector<16xf32> to vector<16x1xf32>
    %27 = tpu.reciprocal %26 {approx = true} : vector<16x1xf32> -> vector<16x1xf32>
    %28 = vector.broadcast %27 : vector<16x1xf32> to vector<16x128xf32>
    %29 = arith.mulf %24, %28 : vector<16x128xf32>
    %30 = arith.truncf %29 : vector<16x128xf32> to vector<16x128xbf16>
    %cst_19 = arith.constant dense<0.000000e+00> : vector<16x128xf32>
    %31 = tpu.matmul %30, %12, %cst_19 {dimension_numbers = #tpu.dot_dimension_numbers<[1], [0], [0], [1], [0, 0, 1, 1], [], []>} : vector<16x128xbf16>, vector<128x128xbf16>, vector<16x128xf32> -> vector<16x128xf32>
    %32 = arith.truncf %31 : vector<16x128xf32> to vector<16x128xbf16>
    %cst_20 = arith.constant dense<0.000000e+00> : vector<16x128xf32>
    %33 = tpu.matmul %32, %10, %cst_20 {dimension_numbers = #tpu.dot_dimension_numbers<[1], [0], [0], [1], [0, 0, 1, 1], [], []>} : vector<16x128xbf16>, vector<128x128xbf16>, vector<16x128xf32> -> vector<16x128xf32>
    %34 = arith.addf %33, %5 : vector<16x128xf32>
    %c1_i32 = arith.constant 1 : i32
    %35 = arith.addf %34, %8 : vector<16x128xf32>
    %36 = arith.truncf %35 : vector<16x128xf32> to vector<16x128xbf16>
    %cst_21 = arith.constant dense<0.000000e+00> : vector<16x128xf32>
    %37 = tpu.matmul %36, %9, %cst_21 {dimension_numbers = #tpu.dot_dimension_numbers<[1], [0], [0], [1], [0, 0, 1, 1], [], []>} : vector<16x128xbf16>, vector<128x128xbf16>, vector<16x128xf32> -> vector<16x128xf32>
    %38 = arith.truncf %37 : vector<16x128xf32> to vector<16x128xbf16>
    %cst_22 = arith.constant dense<0.000000e+00> : vector<16x128xf32>
    %39 = tpu.matmul %38, %11, %cst_22 {dimension_numbers = #tpu.dot_dimension_numbers<[1], [1], [0], [0], [0, 0, 1, 0], [], []>} : vector<16x128xbf16>, vector<128x128xbf16>, vector<16x128xf32> -> vector<16x128xf32>
    %cst_23 = arith.constant 0.0883883461 : f32
    %40 = vector.broadcast %cst_23 : f32 to vector<16x128xf32>
    %41 = arith.mulf %39, %40 : vector<16x128xf32>
    %cst_24 = arith.constant dense<0xFF800000> : vector<16xf32>
    %42 = vector.multi_reduction <maximumf>, %41, %cst_24 [1] : vector<16x128xf32> to vector<16xf32>
    %43 = vector.shape_cast %42 : vector<16xf32> to vector<16x1xf32>
    %44 = vector.broadcast %43 : vector<16x1xf32> to vector<16x128xf32>
    %45 = arith.subf %41, %44 : vector<16x128xf32>
    %46 = math.exp %45 : vector<16x128xf32>
    %cst_25 = arith.constant dense<0.000000e+00> : vector<16xf32>
    %47 = vector.multi_reduction <add>, %46, %cst_25 [1] : vector<16x128xf32> to vector<16xf32>
    %48 = vector.shape_cast %47 : vector<16xf32> to vector<16x1xf32>
    %49 = tpu.reciprocal %48 {approx = true} : vector<16x1xf32> -> vector<16x1xf32>
    %50 = vector.broadcast %49 : vector<16x1xf32> to vector<16x128xf32>
    %51 = arith.mulf %46, %50 : vector<16x128xf32>
    %52 = arith.truncf %51 : vector<16x128xf32> to vector<16x128xbf16>
    %cst_26 = arith.constant dense<0.000000e+00> : vector<16x128xf32>
    %53 = tpu.matmul %52, %12, %cst_26 {dimension_numbers = #tpu.dot_dimension_numbers<[1], [0], [0], [1], [0, 0, 1, 1], [], []>} : vector<16x128xbf16>, vector<128x128xbf16>, vector<16x128xf32> -> vector<16x128xf32>
    %54 = arith.truncf %53 : vector<16x128xf32> to vector<16x128xbf16>
    %cst_27 = arith.constant dense<0.000000e+00> : vector<16x128xf32>
    %55 = tpu.matmul %54, %10, %cst_27 {dimension_numbers = #tpu.dot_dimension_numbers<[1], [0], [0], [1], [0, 0, 1, 1], [], []>} : vector<16x128xbf16>, vector<128x128xbf16>, vector<16x128xf32> -> vector<16x128xf32>
    %56 = arith.addf %55, %34 : vector<16x128xf32>
    %cst_28 = arith.constant dense<0.000000e+00> : vector<16xf32>
    %57 = vector.multi_reduction <add>, %56, %cst_28 [1] : vector<16x128xf32> to vector<16xf32>
    %58 = vector.shape_cast %57 : vector<16xf32> to vector<16x1xf32>
    %cst_29 = arith.constant 7.812500e-03 : f32
    %59 = vector.broadcast %cst_29 : f32 to vector<16x1xf32>
    %60 = arith.mulf %58, %59 : vector<16x1xf32>
    %61 = vector.broadcast %60 : vector<16x1xf32> to vector<16x128xf32>
    %62 = arith.subf %56, %61 : vector<16x128xf32>
    %63 = arith.mulf %62, %62 : vector<16x128xf32>
    %cst_30 = arith.constant dense<0.000000e+00> : vector<16xf32>
    %64 = vector.multi_reduction <add>, %63, %cst_30 [1] : vector<16x128xf32> to vector<16xf32>
    %65 = vector.shape_cast %64 : vector<16xf32> to vector<16x1xf32>
    %cst_31 = arith.constant 7.812500e-03 : f32
    %66 = vector.broadcast %cst_31 : f32 to vector<16x1xf32>
    %67 = arith.mulf %65, %66 : vector<16x1xf32>
    %cst_32 = arith.constant 9.99999974E-6 : f32
    %68 = vector.broadcast %cst_32 : f32 to vector<16x1xf32>
    %69 = arith.addf %67, %68 : vector<16x1xf32>
    %70 = math.rsqrt %69 : vector<16x1xf32>
    %71 = vector.broadcast %70 : vector<16x1xf32> to vector<16x128xf32>
    %72 = arith.mulf %62, %71 : vector<16x128xf32>
    %c0_33 = arith.constant 0 : index
    %c0_34 = arith.constant 0 : index
    %73 = vector.load %arg9[%c0_33, %c0_34] : memref<1x128xf32, #tpu.memory_space<vmem>>, vector<1x128xf32>
    %74 = vector.broadcast %73 : vector<1x128xf32> to vector<16x128xf32>
    %75 = arith.mulf %72, %74 : vector<16x128xf32>
    %c0_35 = arith.constant 0 : index
    %c0_36 = arith.constant 0 : index
    %76 = vector.load %arg10[%c0_35, %c0_36] : memref<1x128xf32, #tpu.memory_space<vmem>>, vector<1x128xf32>
    %77 = vector.broadcast %76 : vector<1x128xf32> to vector<16x128xf32>
    %78 = arith.addf %75, %77 : vector<16x128xf32>
    %c0_37 = arith.constant 0 : index
    %c0_38 = arith.constant 0 : index
    %c0_39 = arith.constant 0 : index
    %79 = vector.load %arg11[%c0_37, %c0_38, %c0_39] : memref<1x16x128xf32, #tpu.memory_space<vmem>>, vector<1x16x128xf32>
    %80 = vector.shape_cast %79 : vector<1x16x128xf32> to vector<16x128xf32>
    %81 = vector.shape_cast %78 : vector<16x128xf32> to vector<1x16x128xf32>
    tpu.vector_store %arg11[%c0_37, %c0_38, %c0_39], %81 {strides = array<i32>} : memref<1x16x128xf32, #tpu.memory_space<vmem>>, vector<1x16x128xf32>,
    return
  }
  func.func @transform_0(%arg0: i32, %arg1: i32) -> (i32, i32, i32) {
    %c0_i32 = arith.constant 0 : i32
    %c0_i32_0 = arith.constant 0 : i32
    return %arg0, %arg1, %c0_i32 : i32, i32, i32
  }
  func.func @transform_1(%arg0: i32, %arg1: i32) -> (i32, i32, i32) {
    %c0_i32 = arith.constant 0 : i32
    %c0_i32_0 = arith.constant 0 : i32
    %c0_i32_1 = arith.constant 0 : i32
    return %arg0, %c0_i32, %c0_i32_0 : i32, i32, i32
  }
  func.func @transform_2(%arg0: i32, %arg1: i32) -> (i32, i32, i32) {
    %c0_i32 = arith.constant 0 : i32
    %c0_i32_0 = arith.constant 0 : i32
    return %arg0, %arg1, %c0_i32 : i32, i32, i32
  }
  func.func @transform_3(%arg0: i32, %arg1: i32) -> (i32, i32) {
    %c0_i32 = arith.constant 0 : i32
    %c0_i32_0 = arith.constant 0 : i32
    %c0_i32_1 = arith.constant 0 : i32
    return %c0_i32, %c0_i32_0 : i32, i32
  }
  func.func @transform_4(%arg0: i32, %arg1: i32) -> (i32, i32) {
    %c0_i32 = arith.constant 0 : i32
    %c0_i32_0 = arith.constant 0 : i32
    %c0_i32_1 = arith.constant 0 : i32
    return %c0_i32, %c0_i32_0 : i32, i32
  }
  func.func @transform_5(%arg0: i32, %arg1: i32) -> (i32, i32) {
    %c0_i32 = arith.constant 0 : i32
    %c0_i32_0 = arith.constant 0 : i32
    %c0_i32_1 = arith.constant 0 : i32
    return %c0_i32, %c0_i32_0 : i32, i32
  }
  func.func @transform_6(%arg0: i32, %arg1: i32) -> (i32, i32) {
    %c0_i32 = arith.constant 0 : i32
    %c0_i32_0 = arith.constant 0 : i32
    %c0_i32_1 = arith.constant 0 : i32
    return %c0_i32, %c0_i32_0 : i32, i32
  }
  func.func @transform_7(%arg0: i32, %arg1: i32) -> (i32, i32) {
    %c0_i32 = arith.constant 0 : i32
    %c0_i32_0 = arith.constant 0 : i32
    %c0_i32_1 = arith.constant 0 : i32
    return %c0_i32, %c0_i32_0 : i32, i32
  }
  func.func @transform_8(%arg0: i32, %arg1: i32) -> (i32, i32) {
    %c0_i32 = arith.constant 0 : i32
    %c0_i32_0 = arith.constant 0 : i32
    %c0_i32_1 = arith.constant 0 : i32
    return %c0_i32, %c0_i32_0 : i32, i32
  }
  func.func @transform_9(%arg0: i32, %arg1: i32) -> (i32, i32, i32) {
    %c0_i32 = arith.constant 0 : i32
    %c0_i32_0 = arith.constant 0 : i32
    return %arg0, %arg1, %c0_i32 : i32, i32, i32
  }
}

</mosaic_0001>

<llo_original>
// kernel: tpu_custom_call.1
$region0: #{tpu_custom_call.1}
  #allocation0 [shape = 'u32[]', space=smem, size = 0x4, offset = 0x4, fixed_abs, tag = 'smem constant byte address 0x4 - core index']
  #allocation1 [shape = 'u32[144,128]{1,0:T(1,128)}', space=vmem, size = 0x12000, scoped, tag = 'internal scratch']
  #allocation2 [shape = 'bf16[128,128]{1,0:T(16,128)(2,1)}', space=vmem, size = 0x8000, scoped, tag = 'scratch operand']
  #allocation3 [shape = 'bf16[128,128]{1,0:T(16,128)(2,1)}', space=vmem, size = 0x8000, scoped, tag = 'scratch operand']
  %s0 = inlined_call_operand.hbm [shape: bf16[2,16,128], index: 0, kind: input, shape index: {}]
  %s1 = inlined_call_operand.hbm [shape: bf16[2,128,128], index: 1, kind: input, shape index: {}]
  %s2 = inlined_call_operand.hbm [shape: bf16[2,16,128], index: 2, kind: input, shape index: {}]
  %s3 = inlined_call_operand.hbm [shape: bf16[128,128], index: 3, kind: input, shape index: {}]
  %s4 = inlined_call_operand.hbm [shape: bf16[128,128], index: 4, kind: input, shape index: {}]
  %s5 = inlined_call_operand.hbm [shape: bf16[128,128], index: 5, kind: input, shape index: {}]
  %s6 = inlined_call_operand.hbm [shape: bf16[128,128], index: 6, kind: input, shape index: {}]
  %s7 = inlined_call_operand.vmem [shape: f32[1,128], index: 7, kind: input, shape index: {}]
  %s8 = inlined_call_operand.vmem [shape: f32[1,128], index: 8, kind: input, shape index: {}]
  %s9 = inlined_call_operand.hbm [shape: f32[2,16,128], index: 9, kind: output, shape index: {}]
  %s10 = sld [smem:[#allocation0]]
  $region101: #{tpu_custom_call.1} parent=0
    _
  %s12 = ssub.s32 1, %s10
  %s13 = scalar_select 0, %s12, %s10
  $region1: #{tpu_custom_call.1} parent=0
    #allocation4 [shape = 'u8[8192]{0}', space=vmem, size = 0x2000, scoped, tag = 'input window, operand 0']
    #allocation5 [shape = 's32[2]{0}', space=sflag, size = 0x8, scoped, tag = 'scoped memory for tpu_custom_call.1']
    #allocation6 [shape = 's32[2]{0}', space=sflag, size = 0x8, scoped, tag = 'scoped memory for tpu_custom_call.1']
    #allocation7 [shape = 'u8[65536]{0}', space=vmem, size = 0x10000, scoped, tag = 'input window, operand 1']
    #allocation8 [shape = 's32[2]{0}', space=sflag, size = 0x8, scoped, tag = 'scoped memory for tpu_custom_call.1']
    #allocation9 [shape = 'u8[8192]{0}', space=vmem, size = 0x2000, scoped, tag = 'input window, operand 2']
    #allocation10 [shape = 'u8[32768]{0}', space=vmem, size = 0x8000, scoped, tag = 'input window, operand 3, single buffered']
    #allocation11 [shape = 's32[1]{0}', space=sflag, size = 0x4, scoped, tag = 'scoped memory for tpu_custom_call.1']
    #allocation12 [shape = 'u8[32768]{0}', space=vmem, size = 0x8000, scoped, tag = 'input window, operand 4, single buffered']
    #allocation13 [shape = 'u8[32768]{0}', space=vmem, size = 0x8000, scoped, tag = 'input window, operand 5, single buffered']
    #allocation14 [shape = 's32[1]{0}', space=sflag, size = 0x4, scoped, tag = 'scoped memory for tpu_custom_call.1']
    #allocation15 [shape = 'u8[32768]{0}', space=vmem, size = 0x8000, scoped, tag = 'input window, operand 6, single buffered']
    #allocation16 [shape = 'u8[16384]{0}', space=vmem, size = 0x4000, scoped, tag = 'output window, operand 0']
    %14 = vsyncpa [#allocation5], 0
    %s15 = scalar_lea.sflag [#allocation5], 1
    %16 = vsyncpa %s15, 0
    %17 = vsyncpa [#allocation8], 0
    %s18 = scalar_lea.sflag [#allocation8], 1
    %19 = vsyncpa %s18, 0
    %20 = vsyncpa [#allocation11], 0
    %21 = vsyncpa [#allocation14], 0
    %22 = vsyncpa [#allocation6], 0
    %s23 = scalar_lea.sflag [#allocation6], 1
    %24 = vsyncpa %s23, 0
    loop: start=0, step=1, limit=4
    $region2: #{tpu_custom_call.1} parent=1 // loop_pre_header
      _
    $region3: #{tpu_custom_call.1} parent=1 // loop_header
      %s26 = sphi 0, %s30
      %p27 = scmp.ge.s32.totalorder %s26, 4
      %s33 = sphi 0, %s45
      %s34 = sphi 0, %s41
      %s35 = sphi 0, %s33
      %s36 = sphi 0, %s34
      %s37 = sphi 0, %s35
      %s38 = sphi 0, %s36
      %s50 = sphi 0, %s52
      %s53 = sphi 0, %s50
      %s54 = sphi 0, %s53
      %s70 = sphi 0, %s54
      %s76 = sphi 0, %s78
      %s79 = sphi 0, %s76
      %s80 = sphi 0, %s79
      %s96 = sphi 0, %s80
      %s104 = sphi 0, %s106
      %s107 = sphi 0, %s104
      %s108 = sphi 0, %s107
      %s124 = sphi 0, %s108
      %s128 = sphi 0, %s128
      %s130 = sphi 0, %s128
      %s131 = sphi 0, %s130
      %s145 = sphi 0, %s131
      %s149 = sphi 0, %s149
      %s151 = sphi 0, %s149
      %s152 = sphi 0, %s151
      %s166 = sphi 0, %s152
      %s170 = sphi 0, %s170
      %s172 = sphi 0, %s170
      %s173 = sphi 0, %s172
      %s187 = sphi 0, %s173
      %s191 = sphi 0, %s191
      %s193 = sphi 0, %s191
      %s194 = sphi 0, %s193
      %s208 = sphi 0, %s194
      %s212 = sphi 0, %s212
      %s214 = sphi 0, %s212
      %s215 = sphi 0, %s214
      %s229 = sphi 0, %s215
      %s233 = sphi 0, %s233
      %s235 = sphi 0, %s233
      %s236 = sphi 0, %s235
      %s250 = sphi 0, %s236
      %s258 = sphi 0, %s260
      %s261 = sphi 0, %s258
      %s262 = sphi 0, %s261
      %s278 = sphi 0, %s262
    $region4: #{tpu_custom_call.1} parent=1 // loop_header_branch
      %29 = sbr.rel (%p27) target = $region8
    $region5: #{tpu_custom_call.1} parent=1 // loop_body
      %s31 = ssub.s32 %s26, 1
      %s32 = ssub.s32 %s26, 2
      %s39 = sadd.s32 1, %s34
      %p40 = scmp.ge.s32.totalorder %s39, 1
      %s41 = scalar_select %p40, 0, %s39
      %s42 = sadd.s32 1, %s33
      %s43 = scalar_select %p40, %s42, %s33
      %p44 = scmp.ge.s32.totalorder %s43, 2
      %s45 = scalar_select %p44, 0, %s43
      %s46 = ssub.s32 %s33, %s45
      %s47 = ssub.s32 %s34, %s41
      %s48 = sor.u32 %s46, %s47
      %p49 = scmp.eq.s32.totalorder %s48, 0
      %s51 = sadd.s32 %s50, 1
      %s52 = scalar_select %p49, %s50, %s51
      %p55 = pneg %p49
      %p56 = scmp.eq.s32.totalorder %s26, 1
      %p57 = por %p55, %p56
      %p58 = scmp.ne.s32.totalorder %s50, %s53
      %p59 = scmp.eq.s32.totalorder %s26, 0
      %p60 = por %p58, %p59
      %p61 = scmp.ne.s32.totalorder %s50, %s53
      %p62 = scmp.eq.s32.totalorder %s31, 1
      %p63 = por %p61, %p62
      %p64 = scmp.ne.s32.totalorder %s53, %s54
      %p65 = scmp.eq.s32.totalorder %s31, 0
      %p66 = por %p64, %p65
      %p67 = scmp.ne.s32.totalorder %s53, %s54
      %p68 = scmp.eq.s32.totalorder %s32, 1
      %p69 = por %p67, %p68
      %p71 = scmp.ne.s32.totalorder %s54, %s70
      %p72 = scmp.eq.s32.totalorder %s32, 0
      %p73 = por %p71, %p72
      %s74 = ssub.s32 %s33, %s45
      %p75 = scmp.eq.s32.totalorder %s74, 0
      %s77 = sadd.s32 %s76, 1
      %s78 = scalar_select %p75, %s76, %s77
      %p81 = pneg %p75
      %p82 = scmp.eq.s32.totalorder %s26, 1
      %p83 = por %p81, %p82
      %p84 = scmp.ne.s32.totalorder %s76, %s79
      %p85 = scmp.eq.s32.totalorder %s26, 0
      %p86 = por %p84, %p85
      %p87 = scmp.ne.s32.totalorder %s76, %s79
      %p88 = scmp.eq.s32.totalorder %s31, 1
      %p89 = por %p87, %p88
      %p90 = scmp.ne.s32.totalorder %s79, %s80
      %p91 = scmp.eq.s32.totalorder %s31, 0
      %p92 = por %p90, %p91
      %p93 = scmp.ne.s32.totalorder %s79, %s80
      %p94 = scmp.eq.s32.totalorder %s32, 1
      %p95 = por %p93, %p94
      %p97 = scmp.ne.s32.totalorder %s80, %s96
      %p98 = scmp.eq.s32.totalorder %s32, 0
      %p99 = por %p97, %p98
      %s100 = ssub.s32 %s33, %s45
      %s101 = ssub.s32 %s34, %s41
      %s102 = sor.u32 %s100, %s101
      %p103 = scmp.eq.s32.totalorder %s102, 0
      %s105 = sadd.s32 %s104, 1
      %s106 = scalar_select %p103, %s104, %s105
      %p109 = pneg %p103
      %p110 = scmp.eq.s32.totalorder %s26, 1
      %p111 = por %p109, %p110
      %p112 = scmp.ne.s32.totalorder %s104, %s107
      %p113 = scmp.eq.s32.totalorder %s26, 0
      %p114 = por %p112, %p113
      %p115 = scmp.ne.s32.totalorder %s104, %s107
      %p116 = scmp.eq.s32.totalorder %s31, 1
      %p117 = por %p115, %p116
      %p118 = scmp.ne.s32.totalorder %s107, %s108
      %p119 = scmp.eq.s32.totalorder %s31, 0
      %p120 = por %p118, %p119
      %p121 = scmp.ne.s32.totalorder %s107, %s108
      %p122 = scmp.eq.s32.totalorder %s32, 1
      %p123 = por %p121, %p122
      %p125 = scmp.ne.s32.totalorder %s108, %s124
      %p126 = scmp.eq.s32.totalorder %s32, 0
      %p127 = por %p125, %p126
      %s129 = sadd.s32 %s128, 1
      %p132 = scmp.eq.s32.totalorder %s26, 1
      %p133 = scmp.ne.s32.totalorder %s128, %s130
      %p134 = scmp.eq.s32.totalorder %s26, 0
      %p135 = por %p133, %p134
      %p136 = scmp.ne.s32.totalorder %s128, %s130
      %p137 = scmp.eq.s32.totalorder %s31, 1
      %p138 = por %p136, %p137
      %p139 = scmp.ne.s32.totalorder %s130, %s131
      %p140 = scmp.eq.s32.totalorder %s31, 0
      %p141 = por %p139, %p140
      %p142 = scmp.ne.s32.totalorder %s130, %s131
      %p143 = scmp.eq.s32.totalorder %s32, 1
      %p144 = por %p142, %p143
      %p146 = scmp.ne.s32.totalorder %s131, %s145
      %p147 = scmp.eq.s32.totalorder %s32, 0
      %p148 = por %p146, %p147
      %s150 = sadd.s32 %s149, 1
      %p153 = scmp.eq.s32.totalorder %s26, 1
      %p154 = scmp.ne.s32.totalorder %s149, %s151
      %p155 = scmp.eq.s32.totalorder %s26, 0
      %p156 = por %p154, %p155
      %p157 = scmp.ne.s32.totalorder %s149, %s151
      %p158 = scmp.eq.s32.totalorder %s31, 1
      %p159 = por %p157, %p158
      %p160 = scmp.ne.s32.totalorder %s151, %s152
      %p161 = scmp.eq.s32.totalorder %s31, 0
      %p162 = por %p160, %p161
      %p163 = scmp.ne.s32.totalorder %s151, %s152
      %p164 = scmp.eq.s32.totalorder %s32, 1
      %p165 = por %p163, %p164
      %p167 = scmp.ne.s32.totalorder %s152, %s166
      %p168 = scmp.eq.s32.totalorder %s32, 0
      %p169 = por %p167, %p168
      %s171 = sadd.s32 %s170, 1
      %p174 = scmp.eq.s32.totalorder %s26, 1
      %p175 = scmp.ne.s32.totalorder %s170, %s172
      %p176 = scmp.eq.s32.totalorder %s26, 0
      %p177 = por %p175, %p176
      %p178 = scmp.ne.s32.totalorder %s170, %s172
      %p179 = scmp.eq.s32.totalorder %s31, 1
      %p180 = por %p178, %p179
      %p181 = scmp.ne.s32.totalorder %s172, %s173
      %p182 = scmp.eq.s32.totalorder %s31, 0
      %p183 = por %p181, %p182
      %p184 = scmp.ne.s32.totalorder %s172, %s173
      %p185 = scmp.eq.s32.totalorder %s32, 1
      %p186 = por %p184, %p185
      %p188 = scmp.ne.s32.totalorder %s173, %s187
      %p189 = scmp.eq.s32.totalorder %s32, 0
      %p190 = por %p188, %p189
      %s192 = sadd.s32 %s191, 1
      %p195 = scmp.eq.s32.totalorder %s26, 1
      %p196 = scmp.ne.s32.totalorder %s191, %s193
      %p197 = scmp.eq.s32.totalorder %s26, 0
      %p198 = por %p196, %p197
      %p199 = scmp.ne.s32.totalorder %s191, %s193
      %p200 = scmp.eq.s32.totalorder %s31, 1
      %p201 = por %p199, %p200
      %p202 = scmp.ne.s32.totalorder %s193, %s194
      %p203 = scmp.eq.s32.totalorder %s31, 0
      %p204 = por %p202, %p203
      %p205 = scmp.ne.s32.totalorder %s193, %s194
      %p206 = scmp.eq.s32.totalorder %s32, 1
      %p207 = por %p205, %p206
      %p209 = scmp.ne.s32.totalorder %s194, %s208
      %p210 = scmp.eq.s32.totalorder %s32, 0
      %p211 = por %p209, %p210
      %s213 = sadd.s32 %s212, 1
      %p216 = scmp.eq.s32.totalorder %s26, 1
      %p217 = scmp.ne.s32.totalorder %s212, %s214
      %p218 = scmp.eq.s32.totalorder %s26, 0
      %p219 = por %p217, %p218
      %p220 = scmp.ne.s32.totalorder %s212, %s214
      %p221 = scmp.eq.s32.totalorder %s31, 1
      %p222 = por %p220, %p221
      %p223 = scmp.ne.s32.totalorder %s214, %s215
      %p224 = scmp.eq.s32.totalorder %s31, 0
      %p225 = por %p223, %p224
      %p226 = scmp.ne.s32.totalorder %s214, %s215
      %p227 = scmp.eq.s32.totalorder %s32, 1
      %p228 = por %p226, %p227
      %p230 = scmp.ne.s32.totalorder %s215, %s229
      %p231 = scmp.eq.s32.totalorder %s32, 0
      %p232 = por %p230, %p231
      %s234 = sadd.s32 %s233, 1
      %p237 = scmp.eq.s32.totalorder %s26, 1
      %p238 = scmp.ne.s32.totalorder %s233, %s235
      %p239 = scmp.eq.s32.totalorder %s26, 0
      %p240 = por %p238, %p239
      %p241 = scmp.ne.s32.totalorder %s233, %s235
      %p242 = scmp.eq.s32.totalorder %s31, 1
      %p243 = por %p241, %p242
      %p244 = scmp.ne.s32.totalorder %s235, %s236
      %p245 = scmp.eq.s32.totalorder %s31, 0
      %p246 = por %p244, %p245
      %p247 = scmp.ne.s32.totalorder %s235, %s236
      %p248 = scmp.eq.s32.totalorder %s32, 1
      %p249 = por %p247, %p248
      %p251 = scmp.ne.s32.totalorder %s236, %s250
      %p252 = scmp.eq.s32.totalorder %s32, 0
      %p253 = por %p251, %p252
      %s254 = ssub.s32 %s33, %s45
      %s255 = ssub.s32 %s34, %s41
      %s256 = sor.u32 %s254, %s255
      %p257 = scmp.eq.s32.totalorder %s256, 0
      %s259 = sadd.s32 %s258, 1
      %s260 = scalar_select %p257, %s258, %s259
      %p263 = pneg %p257
      %p264 = scmp.eq.s32.totalorder %s26, 1
      %p265 = por %p263, %p264
      %p266 = scmp.ne.s32.totalorder %s258, %s261
      %p267 = scmp.eq.s32.totalorder %s26, 0
      %p268 = por %p266, %p267
      %p269 = scmp.ne.s32.totalorder %s258, %s261
      %p270 = scmp.eq.s32.totalorder %s31, 1
      %p271 = por %p269, %p270
      %p272 = scmp.ne.s32.totalorder %s261, %s262
      %p273 = scmp.eq.s32.totalorder %s31, 0
      %p274 = por %p272, %p273
      %p275 = scmp.ne.s32.totalorder %s261, %s262
      %p276 = scmp.eq.s32.totalorder %s32, 1
      %p277 = por %p275, %p276
      %p279 = scmp.ne.s32.totalorder %s262, %s278
      %p280 = scmp.eq.s32.totalorder %s32, 0
      %p281 = por %p279, %p280
      %p282 = scmp.le.s32.totalorder 1, %s26
      %p283 = scmp.lt.s32.totalorder %s26, 3
      %p284 = pnand %p282, %p283
      %p285 = pneg %p284
      // Predicated region
      $region9: #{tpu_custom_call.1} parent=5 // pred_check
        _
      $region10: #{tpu_custom_call.1} parent=5 // pred_check_branch
        %287 = sbr.rel (%p284) target = $region12
      $region11: #{tpu_custom_call.1} parent=5 // pred_region
        %s288 = ssub.s32 %s26, 1
        // Predicated region
        $region13: #{tpu_custom_call.1} parent=11 // pred_check
          %p289 = pneg %p141
        $region14: #{tpu_custom_call.1} parent=11 // pred_check_branch
          %291 = sbr.rel (%p289) target = $region16
        $region15: #{tpu_custom_call.1} parent=11 // pred_region
          %s293 = ssub.s32 1024, 1024
          %294 = vsyncadd [#allocation11], %s293
          %s295 = sshll.u32 [#allocation10], 4
          %s296 = int_to_ptr.vmem [resolvable:$true] %s295
          %301 = dma.hbm_to_vmem [thread:$0]  %s3, 1024, %s296, [#allocation11], 64, 64, 4
        $region16: #{tpu_custom_call.1} parent=11 // pred_fallthru
          _
        // Predicated region
        $region17: #{tpu_custom_call.1} parent=11 // pred_check
          %p302 = pneg %p162
        $region18: #{tpu_custom_call.1} parent=11 // pred_check_branch
          %304 = sbr.rel (%p302) target = $region20
        $region19: #{tpu_custom_call.1} parent=11 // pred_region
          %s306 = ssub.s32 1024, 1024
          %307 = vsyncadd [#allocation11], %s306
          %s308 = sshll.u32 [#allocation12], 4
          %s309 = int_to_ptr.vmem [resolvable:$true] %s308
          %314 = dma.hbm_to_vmem [thread:$0]  %s4, 1024, %s309, [#allocation11], 64, 64, 4
        $region20: #{tpu_custom_call.1} parent=11 // pred_fallthru
          _
        // Predicated region
        $region21: #{tpu_custom_call.1} parent=11 // pred_check
          %p315 = pneg %p183
        $region22: #{tpu_custom_call.1} parent=11 // pred_check_branch
          %317 = sbr.rel (%p315) target = $region24
        $region23: #{tpu_custom_call.1} parent=11 // pred_region
          %s319 = ssub.s32 1024, 1024
          %320 = vsyncadd [#allocation14], %s319
          %s321 = sshll.u32 [#allocation13], 4
          %s322 = int_to_ptr.vmem [resolvable:$true] %s321
          %327 = dma.hbm_to_vmem [thread:$0]  %s5, 1024, %s322, [#allocation14], 64, 64, 4
        $region24: #{tpu_custom_call.1} parent=11 // pred_fallthru
          _
        // Predicated region
        $region25: #{tpu_custom_call.1} parent=11 // pred_check
          %p328 = pneg %p204
        $region26: #{tpu_custom_call.1} parent=11 // pred_check_branch
          %330 = sbr.rel (%p328) target = $region28
        $region27: #{tpu_custom_call.1} parent=11 // pred_region
          %s332 = ssub.s32 1024, 1024
          %333 = vsyncadd [#allocation14], %s332
          %s334 = sshll.u32 [#allocation15], 4
          %s335 = int_to_ptr.vmem [resolvable:$true] %s334
          %340 = dma.hbm_to_vmem [thread:$0]  %s6, 1024, %s335, [#allocation14], 64, 64, 4
        $region28: #{tpu_custom_call.1} parent=11 // pred_fallthru
          _
        // Predicated region
        $region29: #{tpu_custom_call.1} parent=11 // pred_check
          %p341 = pneg %p225
        $region30: #{tpu_custom_call.1} parent=11 // pred_check_branch
          %343 = sbr.rel (%p341) target = $region32
        $region31: #{tpu_custom_call.1} parent=11 // pred_region
          _
        $region32: #{tpu_custom_call.1} parent=11 // pred_fallthru
          _
        // Predicated region
        $region33: #{tpu_custom_call.1} parent=11 // pred_check
          %p344 = pneg %p246
        $region34: #{tpu_custom_call.1} parent=11 // pred_check_branch
          %346 = sbr.rel (%p344) target = $region36
        $region35: #{tpu_custom_call.1} parent=11 // pred_region
          _
        $region36: #{tpu_custom_call.1} parent=11 // pred_fallthru
          _
      $region12: #{tpu_custom_call.1} parent=5 // pred_fallthru
        _
      %p347 = scmp.lt.s32.totalorder %s26, 2
      // Predicated region
      $region37: #{tpu_custom_call.1} parent=5 // pred_check
        %p348 = pneg %p347
      $region38: #{tpu_custom_call.1} parent=5 // pred_check_branch
        %350 = sbr.rel (%p348) target = $region40
      $region39: #{tpu_custom_call.1} parent=5 // pred_region
        // Predicated region
        $region41: #{tpu_custom_call.1} parent=39 // pred_check
          %p351 = pneg %p60
        $region42: #{tpu_custom_call.1} parent=39 // pred_check_branch
          %353 = sbr.rel (%p351) target = $region44
        $region43: #{tpu_custom_call.1} parent=39 // pred_region
          %s354 = sand.u32 %s50, 1
          %s355 = scalar_lea.sflag [#allocation5], %s354
          %s356 = sand.u32 %s50, 1
          %s357 = smul.addr %s356, 8
          %s358 = scalar_lea.vmem [#allocation4], %s357
          %s359 = smul.u32 2, %s34
          %s361 = ssub.s32 128, 128
          %362 = vsyncadd %s355, %s361
          %s363 = smul.addr %s33, 2
          %s364 = sadd.s32 %s359, %s363
          %s365 = smul.addr %s364, 64
          %s366 = scalar_lea.hbm %s0, %s365
          %s367 = sshll.u32 %s358, 4
          %s368 = int_to_ptr.vmem [resolvable:$true] %s367
          %373 = dma.hbm_to_vmem [thread:$0]  %s366, 128, %s368, %s355, 64, 64, 4
        $region44: #{tpu_custom_call.1} parent=39 // pred_fallthru
          _
        // Predicated region
        $region45: #{tpu_custom_call.1} parent=39 // pred_check
          %p374 = pneg %p86
        $region46: #{tpu_custom_call.1} parent=39 // pred_check_branch
          %376 = sbr.rel (%p374) target = $region48
        $region47: #{tpu_custom_call.1} parent=39 // pred_region
          %s377 = sand.u32 %s26, 1
          %s378 = scalar_lea.sflag [#allocation8], %s377
          %s379 = sand.u32 %s76, 1
          %s380 = smul.addr %s379, 64
          %s381 = scalar_lea.vmem [#allocation7], %s380
          %s383 = ssub.s32 1024, 1024
          %384 = vsyncadd %s378, %s383
          %s385 = smul.addr %s33, 16
          %s386 = smul.addr %s385, 64
          %s387 = scalar_lea.hbm %s1, %s386
          %s388 = sshll.u32 %s381, 4
          %s389 = int_to_ptr.vmem [resolvable:$true] %s388
          %394 = dma.hbm_to_vmem [thread:$0]  %s387, 1024, %s389, %s378, 64, 64, 4
        $region48: #{tpu_custom_call.1} parent=39 // pred_fallthru
          _
        // Predicated region
        $region49: #{tpu_custom_call.1} parent=39 // pred_check
          %p395 = pneg %p114
        $region50: #{tpu_custom_call.1} parent=39 // pred_check_branch
          %397 = sbr.rel (%p395) target = $region52
        $region51: #{tpu_custom_call.1} parent=39 // pred_region
          %s398 = sand.u32 %s26, 1
          %s399 = scalar_lea.sflag [#allocation8], %s398
          %s400 = sand.u32 %s104, 1
          %s401 = smul.addr %s400, 8
          %s402 = scalar_lea.vmem [#allocation9], %s401
          %s403 = smul.u32 2, %s34
          %s405 = ssub.s32 128, 128
          %406 = vsyncadd %s399, %s405
          %s407 = smul.addr %s33, 2
          %s408 = sadd.s32 %s403, %s407
          %s409 = smul.addr %s408, 64
          %s410 = scalar_lea.hbm %s2, %s409
          %s411 = sshll.u32 %s402, 4
          %s412 = int_to_ptr.vmem [resolvable:$true] %s411
          %417 = dma.hbm_to_vmem [thread:$0]  %s410, 128, %s412, %s399, 64, 64, 4
        $region52: #{tpu_custom_call.1} parent=39 // pred_fallthru
          _
      $region40: #{tpu_custom_call.1} parent=5 // pred_fallthru
        _
      %p418 = scmp.le.s32.totalorder 1, %s26
      %p419 = scmp.lt.s32.totalorder %s26, 3
      %p420 = pnand %p418, %p419
      %p421 = pneg %p420
      // Predicated region
      $region53: #{tpu_custom_call.1} parent=5 // pred_check
        _
      $region54: #{tpu_custom_call.1} parent=5 // pred_check_branch
        %423 = sbr.rel (%p420) target = $region56
      $region55: #{tpu_custom_call.1} parent=5 // pred_region
        %s424 = ssub.s32 %s26, 1
        %s425 = sand.u32 %s53, 1
        %s426 = scalar_lea.sflag [#allocation5], %s425
        %s427 = sand.u32 %s53, 1
        %s428 = smul.addr %s427, 8
        %s429 = scalar_lea.vmem [#allocation4], %s428
        // Predicated region
        $region57: #{tpu_custom_call.1} parent=55 // pred_check
          %p430 = pneg %p66
        $region58: #{tpu_custom_call.1} parent=55 // pred_check_branch
          %432 = sbr.rel (%p430) target = $region60
        $region59: #{tpu_custom_call.1} parent=55 // pred_region
          %433 = dma.done %s426, 128
        $region60: #{tpu_custom_call.1} parent=55 // pred_fallthru
          _
        %s434 = sand.u32 %s31, 1
        %s435 = scalar_lea.sflag [#allocation8], %s434
        %s436 = sand.u32 %s79, 1
        %s437 = smul.addr %s436, 64
        %s438 = scalar_lea.vmem [#allocation7], %s437
        // Predicated region
        $region61: #{tpu_custom_call.1} parent=55 // pred_check
          %p439 = pneg %p92
        $region62: #{tpu_custom_call.1} parent=55 // pred_check_branch
          %441 = sbr.rel (%p439) target = $region64
        $region63: #{tpu_custom_call.1} parent=55 // pred_region
          %442 = dma.done %s435, 1024
        $region64: #{tpu_custom_call.1} parent=55 // pred_fallthru
          _
        %s443 = sand.u32 %s31, 1
        %s444 = scalar_lea.sflag [#allocation8], %s443
        %s445 = sand.u32 %s107, 1
        %s446 = smul.addr %s445, 8
        %s447 = scalar_lea.vmem [#allocation9], %s446
        // Predicated region
        $region65: #{tpu_custom_call.1} parent=55 // pred_check
          %p448 = pneg %p120
        $region66: #{tpu_custom_call.1} parent=55 // pred_check_branch
          %450 = sbr.rel (%p448) target = $region68
        $region67: #{tpu_custom_call.1} parent=55 // pred_region
          %451 = dma.done %s444, 128
        $region68: #{tpu_custom_call.1} parent=55 // pred_fallthru
          _
        // Predicated region
        $region69: #{tpu_custom_call.1} parent=55 // pred_check
          %p452 = pneg %p141
        $region70: #{tpu_custom_call.1} parent=55 // pred_check_branch
          %454 = sbr.rel (%p452) target = $region72
        $region71: #{tpu_custom_call.1} parent=55 // pred_region
          %455 = dma.done [#allocation11], 1024
        $region72: #{tpu_custom_call.1} parent=55 // pred_fallthru
          _
        // Predicated region
        $region73: #{tpu_custom_call.1} parent=55 // pred_check
          %p456 = pneg %p162
        $region74: #{tpu_custom_call.1} parent=55 // pred_check_branch
          %458 = sbr.rel (%p456) target = $region76
        $region75: #{tpu_custom_call.1} parent=55 // pred_region
          %459 = dma.done [#allocation11], 1024
        $region76: #{tpu_custom_call.1} parent=55 // pred_fallthru
          _
        // Predicated region
        $region77: #{tpu_custom_call.1} parent=55 // pred_check
          %p460 = pneg %p183
        $region78: #{tpu_custom_call.1} parent=55 // pred_check_branch
          %462 = sbr.rel (%p460) target = $region80
        $region79: #{tpu_custom_call.1} parent=55 // pred_region
          %463 = dma.done [#allocation14], 1024
        $region80: #{tpu_custom_call.1} parent=55 // pred_fallthru
          _
        // Predicated region
        $region81: #{tpu_custom_call.1} parent=55 // pred_check
          %p464 = pneg %p204
        $region82: #{tpu_custom_call.1} parent=55 // pred_check_branch
          %466 = sbr.rel (%p464) target = $region84
        $region83: #{tpu_custom_call.1} parent=55 // pred_region
          %467 = dma.done [#allocation14], 1024
        $region84: #{tpu_custom_call.1} parent=55 // pred_fallthru
          _
        %s468 = sand.u32 %s53, 1
        %s469 = scalar_lea.sflag [#allocation5], %s468
        %s470 = sand.u32 %s53, 1
        %s471 = smul.addr %s470, 8
        %s472 = scalar_lea.vmem [#allocation4], %s471
        %p473 = pneg %p66
        %p474 = pneg %p63
        %s475 = sand.u32 %s31, 1
        %s476 = scalar_lea.sflag [#allocation8], %s475
        %s477 = sand.u32 %s79, 1
        %s478 = smul.addr %s477, 64
        %s479 = scalar_lea.vmem [#allocation7], %s478
        %p480 = pneg %p92
        %p481 = pneg %p89
        %s482 = sand.u32 %s31, 1
        %s483 = scalar_lea.sflag [#allocation8], %s482
        %s484 = sand.u32 %s107, 1
        %s485 = smul.addr %s484, 8
        %s486 = scalar_lea.vmem [#allocation9], %s485
        %p487 = pneg %p120
        %p488 = pneg %p117
        %p489 = pneg %p141
        %p490 = pneg %p138
        %p491 = pneg %p162
        %p492 = pneg %p159
        %p493 = pneg %p183
        %p494 = pneg %p180
        %p495 = pneg %p204
        %p496 = pneg %p201
        %p497 = pneg %p225
        %p498 = pneg %p222
        %p499 = pneg %p246
        %p500 = pneg %p243
        %p501 = pneg %p274
        %p502 = pneg %p271
        %s503 = sand.u32 %s261, 1
        %s504 = scalar_lea.sflag [#allocation6], %s503
        %s505 = sand.u32 %s261, 1
        %s506 = smul.addr %s505, 16
        %s507 = scalar_lea.vmem [#allocation16], %s506
        %s508 = smul.u32 2, %s36
        %s509 = smul.u32 2, %s36
        %s510 = smul.u32 2, %s36
        %p512 = scmp.eq.s32.totalorder %s36, 0
        // Predicated region
        $region85: #{tpu_custom_call.1} parent=55 // pred_check
          %p513 = pneg %p512
        $region86: #{tpu_custom_call.1} parent=55 // pred_check_branch
          %515 = sbr.rel (%p513) target = $region88
        $region87: #{tpu_custom_call.1} parent=55 // pred_region
          %v516 = vld [vmem:[%s438] sm:$0xf]
          %v517 = vld [vmem:[%s438 + $0x4] sm:$0xf]
          %v518 = vld [vmem:[%s438 + $0x8] sm:$0xf]
          %v519 = vld [vmem:[%s438 + $0xc] sm:$0xf]
          %v520 = vld [vmem:[%s438 + $0x10] sm:$0xf]
          %v521 = vld [vmem:[%s438 + $0x14] sm:$0xf]
          %v522 = vld [vmem:[%s438 + $0x18] sm:$0xf]
          %v523 = vld [vmem:[%s438 + $0x1c] sm:$0xf]
          %v524 = vld [vmem:[%s438 + $0x20] sm:$0xf]
          %v525 = vld [vmem:[%s438 + $0x24] sm:$0xf]
          %v526 = vld [vmem:[%s438 + $0x28] sm:$0xf]
          %v527 = vld [vmem:[%s438 + $0x2c] sm:$0xf]
          %v528 = vld [vmem:[%s438 + $0x30] sm:$0xf]
          %v529 = vld [vmem:[%s438 + $0x34] sm:$0xf]
          %v530 = vld [vmem:[%s438 + $0x38] sm:$0xf]
          %v531 = vld [vmem:[%s438 + $0x3c] sm:$0xf]
          %v532 = vld [vmem:[#allocation12] sm:$0xf]
          %v533 = vld [vmem:[#allocation12 + $0x4] sm:$0xf]
          %v534 = vld [vmem:[#allocation12 + $0x8] sm:$0xf]
          %v535 = vld [vmem:[#allocation12 + $0xc] sm:$0xf]
          %v536 = vld [vmem:[#allocation12 + $0x10] sm:$0xf]
          %v537 = vld [vmem:[#allocation12 + $0x14] sm:$0xf]
          %v538 = vld [vmem:[#allocation12 + $0x18] sm:$0xf]
          %v539 = vld [vmem:[#allocation12 + $0x1c] sm:$0xf]
          %v540 = vld [vmem:[#allocation12 + $0x20] sm:$0xf]
          %v541 = vld [vmem:[#allocation12 + $0x24] sm:$0xf]
          %v542 = vld [vmem:[#allocation12 + $0x28] sm:$0xf]
          %v543 = vld [vmem:[#allocation12 + $0x2c] sm:$0xf]
          %v544 = vld [vmem:[#allocation12 + $0x30] sm:$0xf]
          %v545 = vld [vmem:[#allocation12 + $0x34] sm:$0xf]
          %v546 = vld [vmem:[#allocation12 + $0x38] sm:$0xf]
          %v547 = vld [vmem:[#allocation12 + $0x3c] sm:$0xf]
          %v564 = vunpack.c.l.b16 %v516
          %v565 = vunpack.c.l.b16 %v517
          %v566 = vunpack.c.l.b16 %v518
          %v567 = vunpack.c.l.b16 %v519
          %v568 = vunpack.c.l.b16 %v520
          %v569 = vunpack.c.l.b16 %v521
          %v570 = vunpack.c.l.b16 %v522
          %v571 = vunpack.c.l.b16 %v523
          %v572 = vunpack.c.l.b16 %v524
          %v573 = vunpack.c.l.b16 %v525
          %v574 = vunpack.c.l.b16 %v526
          %v575 = vunpack.c.l.b16 %v527
          %v576 = vunpack.c.l.b16 %v528
          %v577 = vunpack.c.l.b16 %v529
          %v578 = vunpack.c.l.b16 %v530
          %v579 = vunpack.c.l.b16 %v531
          %v580 = vpack.c.b16 %v565, %v564
          %v581 = vpack.c.b16 %v567, %v566
          %v582 = vpack.c.b16 %v569, %v568
          %v583 = vpack.c.b16 %v571, %v570
          %v584 = vpack.c.b16 %v573, %v572
          %v585 = vpack.c.b16 %v575, %v574
          %v586 = vpack.c.b16 %v577, %v576
          %v587 = vpack.c.b16 %v579, %v578
          %v612 = vunpack.c.l.b16 %v532
          %v613 = vunpack.c.l.b16 %v533
          %v614 = vunpack.c.l.b16 %v534
          %v615 = vunpack.c.l.b16 %v535
          %v616 = vunpack.c.l.b16 %v536
          %v617 = vunpack.c.l.b16 %v537
          %v618 = vunpack.c.l.b16 %v538
          %v619 = vunpack.c.l.b16 %v539
          %v620 = vunpack.c.l.b16 %v540
          %v621 = vunpack.c.l.b16 %v541
          %v622 = vunpack.c.l.b16 %v542
          %v623 = vunpack.c.l.b16 %v543
          %v624 = vunpack.c.l.b16 %v544
          %v625 = vunpack.c.l.b16 %v545
          %v626 = vunpack.c.l.b16 %v546
          %v627 = vunpack.c.l.b16 %v547
          %v628 = vpack.c.b16 %v613, %v612
          %v629 = vpack.c.b16 %v615, %v614
          %v630 = vpack.c.b16 %v617, %v616
          %v631 = vpack.c.b16 %v619, %v618
          %v632 = vpack.c.b16 %v621, %v620
          %v633 = vpack.c.b16 %v623, %v622
          %v634 = vpack.c.b16 %v625, %v624
          %v635 = vpack.c.b16 %v627, %v626
          %644 = vmatprep.subr.bf16.mxu0 0
          %645 = vmatpush1.bf16.msra.mxu0 %v628
          %646 = vmatprep.subr.bf16.mxu0 0
          %647 = vmatpush1.bf16.msra.mxu0 %v629
          %648 = vmatprep.subr.bf16.mxu0 0
          %649 = vmatpush1.bf16.msra.mxu0 %v630
          %650 = vmatprep.subr.bf16.mxu0 0
          %651 = vmatpush1.bf16.msra.mxu0 %v631
          %652 = vmatprep.subr.bf16.mxu0 0
          %653 = vmatpush1.bf16.msra.mxu0 %v632
          %654 = vmatprep.subr.bf16.mxu0 0
          %655 = vmatpush1.bf16.msra.mxu0 %v633
          %656 = vmatprep.subr.bf16.mxu0 0
          %657 = vmatpush1.bf16.msra.mxu0 %v634
          %658 = vmatprep.subr.bf16.mxu0 0
          %659 = vmatpush1.bf16.msra.mxu0 %v635
          %660 = vmatprep.subr.bf16.mxu0 0
          %661 = vmatpush1.bf16.msra.mxu0 0
          %662 = vmatprep.subr.bf16.mxu0 0
          %663 = vmatpush1.bf16.msra.mxu0 0
          %664 = vmatprep.subr.bf16.mxu0 0
          %665 = vmatpush1.bf16.msra.mxu0 0
          %666 = vmatprep.subr.bf16.mxu0 0
          %667 = vmatpush1.bf16.msra.mxu0 0
          %668 = vmatprep.subr.bf16.mxu0 0
          %669 = vmatpush1.bf16.msra.mxu0 0
          %670 = vmatprep.subr.bf16.mxu0 0
          %671 = vmatpush1.bf16.msra.mxu0 0
          %672 = vmatprep.subr.bf16.mxu0 0
          %673 = vmatpush1.bf16.msra.mxu0 0
          %674 = vmatprep.subr.bf16.mxu0 0
          %675 = vmatpush1.bf16.msra.mxu0 0
          %676 = vmatprep.mubr.bf16.mxu0 0
          %677 = vmatmul.mubr.bf16.gmra.mrb[0].mxu0 %v580
          %v678 = vpop.f32.mrb[0].mxu0
          %v679 = vadd.f32 0.0, %v678
          %v680 = vpop.f32.mrb[0].mxu0
          %v681 = vpop.f32.mrb[0].mxu0
          %v682 = vadd.f32 0.0, %v681
          %v683 = vpop.f32.mrb[0].mxu0
          %684 = vmatprep.mubr.bf16.mxu0 0
          %685 = vmatmul.mubr.bf16.gmra.mrb[0].mxu0 %v581
          %v686 = vpop.f32.mrb[0].mxu0
          %v687 = vadd.f32 0.0, %v686
          %v688 = vpop.f32.mrb[0].mxu0
          %v689 = vpop.f32.mrb[0].mxu0
          %v690 = vadd.f32 0.0, %v689
          %v691 = vpop.f32.mrb[0].mxu0
          %692 = vmatprep.mubr.bf16.mxu0 0
          %693 = vmatmul.mubr.bf16.gmra.mrb[0].mxu0 %v582
          %v694 = vpop.f32.mrb[0].mxu0
          %v695 = vadd.f32 0.0, %v694
          %v696 = vpop.f32.mrb[0].mxu0
          %v697 = vpop.f32.mrb[0].mxu0
          %v698 = vadd.f32 0.0, %v697
          %v699 = vpop.f32.mrb[0].mxu0
          %700 = vmatprep.mubr.bf16.mxu0 0
          %701 = vmatmul.mubr.bf16.gmra.mrb[0].mxu0 %v583
          %v702 = vpop.f32.mrb[0].mxu0
          %v703 = vadd.f32 0.0, %v702
          %v704 = vpop.f32.mrb[0].mxu0
          %v705 = vpop.f32.mrb[0].mxu0
          %v706 = vadd.f32 0.0, %v705
          %v707 = vpop.f32.mrb[0].mxu0
          %708 = vmatprep.mubr.bf16.mxu0 0
          %709 = vmatmul.mubr.bf16.gmra.mrb[0].mxu0 %v584
          %v710 = vpop.f32.mrb[0].mxu0
          %v711 = vadd.f32 0.0, %v710
          %v712 = vpop.f32.mrb[0].mxu0
          %v713 = vpop.f32.mrb[0].mxu0
          %v714 = vadd.f32 0.0, %v713
          %v715 = vpop.f32.mrb[0].mxu0
          %716 = vmatprep.mubr.bf16.mxu0 0
          %717 = vmatmul.mubr.bf16.gmra.mrb[0].mxu0 %v585
          %v718 = vpop.f32.mrb[0].mxu0
          %v719 = vadd.f32 0.0, %v718
          %v720 = vpop.f32.mrb[0].mxu0
          %v721 = vpop.f32.mrb[0].mxu0
          %v722 = vadd.f32 0.0, %v721
          %v723 = vpop.f32.mrb[0].mxu0
          %724 = vmatprep.mubr.bf16.mxu0 0
          %725 = vmatmul.mubr.bf16.gmra.mrb[0].mxu0 %v586
          %v726 = vpop.f32.mrb[0].mxu0
          %v727 = vadd.f32 0.0, %v726
          %v728 = vpop.f32.mrb[0].mxu0
          %v729 = vpop.f32.mrb[0].mxu0
          %v730 = vadd.f32 0.0, %v729
          %v731 = vpop.f32.mrb[0].mxu0
          %732 = vmatprep.mubr.bf16.mxu0 0
          %733 = vmatmul.mubr.bf16.gmra.mrb[0].mxu0 %v587
          %v734 = vpop.f32.mrb[0].mxu0
          %v735 = vadd.f32 0.0, %v734
          %v736 = vpop.f32.mrb[0].mxu0
          %v737 = vpop.f32.mrb[0].mxu0
          %v738 = vadd.f32 0.0, %v737
          %v739 = vpop.f32.mrb[0].mxu0
          %740 = vdwg.mxu0
          %v741 = vpack.c.bf16 %v682, %v679
          %v742 = vpack.c.bf16 %v690, %v687
          %v743 = vpack.c.bf16 %v698, %v695
          %v744 = vpack.c.bf16 %v706, %v703
          %v745 = vpack.c.bf16 %v714, %v711
          %v746 = vpack.c.bf16 %v722, %v719
          %v747 = vpack.c.bf16 %v730, %v727
          %v748 = vpack.c.bf16 %v738, %v735
          %749 = vst [vmem:[#allocation2] sm:$0xff] %v741
          %750 = vst [vmem:[#allocation2 + $0x8] sm:$0xff] %v742
          %751 = vst [vmem:[#allocation2 + $0x10] sm:$0xff] %v743
          %752 = vst [vmem:[#allocation2 + $0x18] sm:$0xff] %v744
          %753 = vst [vmem:[#allocation2 + $0x20] sm:$0xff] %v745
          %754 = vst [vmem:[#allocation2 + $0x28] sm:$0xff] %v746
          %755 = vst [vmem:[#allocation2 + $0x30] sm:$0xff] %v747
          %756 = vst [vmem:[#allocation2 + $0x38] sm:$0xff] %v748
          %v757 = vld [vmem:[#allocation13] sm:$0xf]
          %v758 = vld [vmem:[#allocation13 + $0x4] sm:$0xf]
          %v759 = vld [vmem:[#allocation13 + $0x8] sm:$0xf]
          %v760 = vld [vmem:[#allocation13 + $0xc] sm:$0xf]
          %v761 = vld [vmem:[#allocation13 + $0x10] sm:$0xf]
          %v762 = vld [vmem:[#allocation13 + $0x14] sm:$0xf]
          %v763 = vld [vmem:[#allocation13 + $0x18] sm:$0xf]
          %v764 = vld [vmem:[#allocation13 + $0x1c] sm:$0xf]
          %v765 = vld [vmem:[#allocation13 + $0x20] sm:$0xf]
          %v766 = vld [vmem:[#allocation13 + $0x24] sm:$0xf]
          %v767 = vld [vmem:[#allocation13 + $0x28] sm:$0xf]
          %v768 = vld [vmem:[#allocation13 + $0x2c] sm:$0xf]
          %v769 = vld [vmem:[#allocation13 + $0x30] sm:$0xf]
          %v770 = vld [vmem:[#allocation13 + $0x34] sm:$0xf]
          %v771 = vld [vmem:[#allocation13 + $0x38] sm:$0xf]
          %v772 = vld [vmem:[#allocation13 + $0x3c] sm:$0xf]
          %v789 = vunpack.c.l.b16 %v757
          %v790 = vunpack.c.l.b16 %v758
          %v791 = vunpack.c.l.b16 %v759
          %v792 = vunpack.c.l.b16 %v760
          %v793 = vunpack.c.l.b16 %v761
          %v794 = vunpack.c.l.b16 %v762
          %v795 = vunpack.c.l.b16 %v763
          %v796 = vunpack.c.l.b16 %v764
          %v797 = vunpack.c.l.b16 %v765
          %v798 = vunpack.c.l.b16 %v766
          %v799 = vunpack.c.l.b16 %v767
          %v800 = vunpack.c.l.b16 %v768
          %v801 = vunpack.c.l.b16 %v769
          %v802 = vunpack.c.l.b16 %v770
          %v803 = vunpack.c.l.b16 %v771
          %v804 = vunpack.c.l.b16 %v772
          %v805 = vpack.c.b16 %v790, %v789
          %v806 = vpack.c.b16 %v792, %v791
          %v807 = vpack.c.b16 %v794, %v793
          %v808 = vpack.c.b16 %v796, %v795
          %v809 = vpack.c.b16 %v798, %v797
          %v810 = vpack.c.b16 %v800, %v799
          %v811 = vpack.c.b16 %v802, %v801
          %v812 = vpack.c.b16 %v804, %v803
          %821 = vmatprep.subr.bf16.mxu0 0
          %822 = vmatpush1.bf16.msra.mxu0 %v805
          %823 = vmatprep.subr.bf16.mxu0 0
          %824 = vmatpush1.bf16.msra.mxu0 %v806
          %825 = vmatprep.subr.bf16.mxu0 0
          %826 = vmatpush1.bf16.msra.mxu0 %v807
          %827 = vmatprep.subr.bf16.mxu0 0
          %828 = vmatpush1.bf16.msra.mxu0 %v808
          %829 = vmatprep.subr.bf16.mxu0 0
          %830 = vmatpush1.bf16.msra.mxu0 %v809
          %831 = vmatprep.subr.bf16.mxu0 0
          %832 = vmatpush1.bf16.msra.mxu0 %v810
          %833 = vmatprep.subr.bf16.mxu0 0
          %834 = vmatpush1.bf16.msra.mxu0 %v811
          %835 = vmatprep.subr.bf16.mxu0 0
          %836 = vmatpush1.bf16.msra.mxu0 %v812
          %837 = vmatprep.subr.bf16.mxu0 0
          %838 = vmatpush1.bf16.msra.mxu0 0
          %839 = vmatprep.subr.bf16.mxu0 0
          %840 = vmatpush1.bf16.msra.mxu0 0
          %841 = vmatprep.subr.bf16.mxu0 0
          %842 = vmatpush1.bf16.msra.mxu0 0
          %843 = vmatprep.subr.bf16.mxu0 0
          %844 = vmatpush1.bf16.msra.mxu0 0
          %845 = vmatprep.subr.bf16.mxu0 0
          %846 = vmatpush1.bf16.msra.mxu0 0
          %847 = vmatprep.subr.bf16.mxu0 0
          %848 = vmatpush1.bf16.msra.mxu0 0
          %849 = vmatprep.subr.bf16.mxu0 0
          %850 = vmatpush1.bf16.msra.mxu0 0
          %851 = vmatprep.subr.bf16.mxu0 0
          %852 = vmatpush1.bf16.msra.mxu0 0
          %853 = vmatprep.mubr.bf16.mxu0 0
          %854 = vmatmul.mubr.bf16.gmra.mrb[0].mxu0 %v580
          %v855 = vpop.f32.mrb[0].mxu0
          %v856 = vadd.f32 0.0, %v855
          %v857 = vpop.f32.mrb[0].mxu0
          %v858 = vpop.f32.mrb[0].mxu0
          %v859 = vadd.f32 0.0, %v858
          %v860 = vpop.f32.mrb[0].mxu0
          %861 = vmatprep.mubr.bf16.mxu0 0
          %862 = vmatmul.mubr.bf16.gmra.mrb[0].mxu0 %v581
          %v863 = vpop.f32.mrb[0].mxu0
          %v864 = vadd.f32 0.0, %v863
          %v865 = vpop.f32.mrb[0].mxu0
          %v866 = vpop.f32.mrb[0].mxu0
          %v867 = vadd.f32 0.0, %v866
          %v868 = vpop.f32.mrb[0].mxu0
          %869 = vmatprep.mubr.bf16.mxu0 0
          %870 = vmatmul.mubr.bf16.gmra.mrb[0].mxu0 %v582
          %v871 = vpop.f32.mrb[0].mxu0
          %v872 = vadd.f32 0.0, %v871
          %v873 = vpop.f32.mrb[0].mxu0
          %v874 = vpop.f32.mrb[0].mxu0
          %v875 = vadd.f32 0.0, %v874
          %v876 = vpop.f32.mrb[0].mxu0
          %877 = vmatprep.mubr.bf16.mxu0 0
          %878 = vmatmul.mubr.bf16.gmra.mrb[0].mxu0 %v583
          %v879 = vpop.f32.mrb[0].mxu0
          %v880 = vadd.f32 0.0, %v879
          %v881 = vpop.f32.mrb[0].mxu0
          %v882 = vpop.f32.mrb[0].mxu0
          %v883 = vadd.f32 0.0, %v882
          %v884 = vpop.f32.mrb[0].mxu0
          %885 = vmatprep.mubr.bf16.mxu0 0
          %886 = vmatmul.mubr.bf16.gmra.mrb[0].mxu0 %v584
          %v887 = vpop.f32.mrb[0].mxu0
          %v888 = vadd.f32 0.0, %v887
          %v889 = vpop.f32.mrb[0].mxu0
          %v890 = vpop.f32.mrb[0].mxu0
          %v891 = vadd.f32 0.0, %v890
          %v892 = vpop.f32.mrb[0].mxu0
          %893 = vmatprep.mubr.bf16.mxu0 0
          %894 = vmatmul.mubr.bf16.gmra.mrb[0].mxu0 %v585
          %v895 = vpop.f32.mrb[0].mxu0
          %v896 = vadd.f32 0.0, %v895
          %v897 = vpop.f32.mrb[0].mxu0
          %v898 = vpop.f32.mrb[0].mxu0
          %v899 = vadd.f32 0.0, %v898
          %v900 = vpop.f32.mrb[0].mxu0
          %901 = vmatprep.mubr.bf16.mxu0 0
          %902 = vmatmul.mubr.bf16.gmra.mrb[0].mxu0 %v586
          %v903 = vpop.f32.mrb[0].mxu0
          %v904 = vadd.f32 0.0, %v903
          %v905 = vpop.f32.mrb[0].mxu0
          %v906 = vpop.f32.mrb[0].mxu0
          %v907 = vadd.f32 0.0, %v906
          %v908 = vpop.f32.mrb[0].mxu0
          %909 = vmatprep.mubr.bf16.mxu0 0
          %910 = vmatmul.mubr.bf16.gmra.mrb[0].mxu0 %v587
          %v911 = vpop.f32.mrb[0].mxu0
          %v912 = vadd.f32 0.0, %v911
          %v913 = vpop.f32.mrb[0].mxu0
          %v914 = vpop.f32.mrb[0].mxu0
          %v915 = vadd.f32 0.0, %v914
          %v916 = vpop.f32.mrb[0].mxu0
          %917 = vdwg.mxu0
          %v918 = vpack.c.bf16 %v859, %v856
          %v919 = vpack.c.bf16 %v867, %v864
          %v920 = vpack.c.bf16 %v875, %v872
          %v921 = vpack.c.bf16 %v883, %v880
          %v922 = vpack.c.bf16 %v891, %v888
          %v923 = vpack.c.bf16 %v899, %v896
          %v924 = vpack.c.bf16 %v907, %v904
          %v925 = vpack.c.bf16 %v915, %v912
          %926 = vst [vmem:[#allocation3] sm:$0xff] %v918
          %927 = vst [vmem:[#allocation3 + $0x8] sm:$0xff] %v919
          %928 = vst [vmem:[#allocation3 + $0x10] sm:$0xff] %v920
          %929 = vst [vmem:[#allocation3 + $0x18] sm:$0xff] %v921
          %930 = vst [vmem:[#allocation3 + $0x20] sm:$0xff] %v922
          %931 = vst [vmem:[#allocation3 + $0x28] sm:$0xff] %v923
          %932 = vst [vmem:[#allocation3 + $0x30] sm:$0xff] %v924
          %933 = vst [vmem:[#allocation3 + $0x38] sm:$0xff] %v925
        $region88: #{tpu_custom_call.1} parent=55 // pred_fallthru
          _
        %v934 = vld [vmem:[%s429] sm:$0xf]
        %v935 = vld [vmem:[%s429 + $0x4] sm:$0xf]
        %v936 = vunpack.c.l.bf16 %v934
        %v937 = vunpack.c.l.bf16 %v935
        %v938 = vld [vmem:[%s447] sm:$0xf]
        %v939 = vld [vmem:[%s447 + $0x4] sm:$0xf]
        %v940 = vunpack.c.l.bf16 %v938
        %v941 = vunpack.c.l.bf16 %v939
        %v942 = vld [vmem:[#allocation10] sm:$0xf]
        %v943 = vld [vmem:[#allocation10 + $0x4] sm:$0xf]
        %v944 = vld [vmem:[#allocation10 + $0x8] sm:$0xf]
        %v945 = vld [vmem:[#allocation10 + $0xc] sm:$0xf]
        %v946 = vld [vmem:[#allocation10 + $0x10] sm:$0xf]
        %v947 = vld [vmem:[#allocation10 + $0x14] sm:$0xf]
        %v948 = vld [vmem:[#allocation10 + $0x18] sm:$0xf]
        %v949 = vld [vmem:[#allocation10 + $0x1c] sm:$0xf]
        %v950 = vld [vmem:[#allocation10 + $0x20] sm:$0xf]
        %v951 = vld [vmem:[#allocation10 + $0x24] sm:$0xf]
        %v952 = vld [vmem:[#allocation10 + $0x28] sm:$0xf]
        %v953 = vld [vmem:[#allocation10 + $0x2c] sm:$0xf]
        %v954 = vld [vmem:[#allocation10 + $0x30] sm:$0xf]
        %v955 = vld [vmem:[#allocation10 + $0x34] sm:$0xf]
        %v956 = vld [vmem:[#allocation10 + $0x38] sm:$0xf]
        %v957 = vld [vmem:[#allocation10 + $0x3c] sm:$0xf]
        %v958 = vld [vmem:[#allocation15] sm:$0xf]
        %v959 = vld [vmem:[#allocation15 + $0x4] sm:$0xf]
        %v960 = vld [vmem:[#allocation15 + $0x8] sm:$0xf]
        %v961 = vld [vmem:[#allocation15 + $0xc] sm:$0xf]
        %v962 = vld [vmem:[#allocation15 + $0x10] sm:$0xf]
        %v963 = vld [vmem:[#allocation15 + $0x14] sm:$0xf]
        %v964 = vld [vmem:[#allocation15 + $0x18] sm:$0xf]
        %v965 = vld [vmem:[#allocation15 + $0x1c] sm:$0xf]
        %v966 = vld [vmem:[#allocation15 + $0x20] sm:$0xf]
        %v967 = vld [vmem:[#allocation15 + $0x24] sm:$0xf]
        %v968 = vld [vmem:[#allocation15 + $0x28] sm:$0xf]
        %v969 = vld [vmem:[#allocation15 + $0x2c] sm:$0xf]
        %v970 = vld [vmem:[#allocation15 + $0x30] sm:$0xf]
        %v971 = vld [vmem:[#allocation15 + $0x34] sm:$0xf]
        %v972 = vld [vmem:[#allocation15 + $0x38] sm:$0xf]
        %v973 = vld [vmem:[#allocation15 + $0x3c] sm:$0xf]
        %v974 = vld [vmem:[#allocation2] sm:$0xff]
        %v975 = vld [vmem:[#allocation2 + $0x8] sm:$0xff]
        %v976 = vld [vmem:[#allocation2 + $0x10] sm:$0xff]
        %v977 = vld [vmem:[#allocation2 + $0x18] sm:$0xff]
        %v978 = vld [vmem:[#allocation2 + $0x20] sm:$0xff]
        %v979 = vld [vmem:[#allocation2 + $0x28] sm:$0xff]
        %v980 = vld [vmem:[#allocation2 + $0x30] sm:$0xff]
        %v981 = vld [vmem:[#allocation2 + $0x38] sm:$0xff]
        %v982 = vld [vmem:[#allocation3] sm:$0xff]
        %v983 = vld [vmem:[#allocation3 + $0x8] sm:$0xff]
        %v984 = vld [vmem:[#allocation3 + $0x10] sm:$0xff]
        %v985 = vld [vmem:[#allocation3 + $0x18] sm:$0xff]
        %v986 = vld [vmem:[#allocation3 + $0x20] sm:$0xff]
        %v987 = vld [vmem:[#allocation3 + $0x28] sm:$0xff]
        %v988 = vld [vmem:[#allocation3 + $0x30] sm:$0xff]
        %v989 = vld [vmem:[#allocation3 + $0x38] sm:$0xff]
        %v990 = vadd.f32 %v936, %v940
        %v991 = vadd.f32 %v937, %v941
        %v992 = vpack.c.bf16 %v991, %v990
        %v1009 = vunpack.c.l.b16 %v942
        %v1010 = vunpack.c.l.b16 %v943
        %v1011 = vunpack.c.l.b16 %v944
        %v1012 = vunpack.c.l.b16 %v945
        %v1013 = vunpack.c.l.b16 %v946
        %v1014 = vunpack.c.l.b16 %v947
        %v1015 = vunpack.c.l.b16 %v948
        %v1016 = vunpack.c.l.b16 %v949
        %v1017 = vunpack.c.l.b16 %v950
        %v1018 = vunpack.c.l.b16 %v951
        %v1019 = vunpack.c.l.b16 %v952
        %v1020 = vunpack.c.l.b16 %v953
        %v1021 = vunpack.c.l.b16 %v954
        %v1022 = vunpack.c.l.b16 %v955
        %v1023 = vunpack.c.l.b16 %v956
        %v1024 = vunpack.c.l.b16 %v957
        %v1025 = vpack.c.b16 %v1010, %v1009
        %v1026 = vpack.c.b16 %v1012, %v1011
        %v1027 = vpack.c.b16 %v1014, %v1013
        %v1028 = vpack.c.b16 %v1016, %v1015
        %v1029 = vpack.c.b16 %v1018, %v1017
        %v1030 = vpack.c.b16 %v1020, %v1019
        %v1031 = vpack.c.b16 %v1022, %v1021
        %v1032 = vpack.c.b16 %v1024, %v1023
        %1041 = vmatprep.subr.bf16.mxu0 0
        %1042 = vmatpush1.bf16.msra.mxu0 %v1025
        %1043 = vmatprep.subr.bf16.mxu0 0
        %1044 = vmatpush1.bf16.msra.mxu0 %v1026
        %1045 = vmatprep.subr.bf16.mxu0 0
        %1046 = vmatpush1.bf16.msra.mxu0 %v1027
        %1047 = vmatprep.subr.bf16.mxu0 0
        %1048 = vmatpush1.bf16.msra.mxu0 %v1028
        %1049 = vmatprep.subr.bf16.mxu0 0
        %1050 = vmatpush1.bf16.msra.mxu0 %v1029
        %1051 = vmatprep.subr.bf16.mxu0 0
        %1052 = vmatpush1.bf16.msra.mxu0 %v1030
        %1053 = vmatprep.subr.bf16.mxu0 0
        %1054 = vmatpush1.bf16.msra.mxu0 %v1031
        %1055 = vmatprep.subr.bf16.mxu0 0
        %1056 = vmatpush1.bf16.msra.mxu0 %v1032
        %1057 = vmatprep.subr.bf16.mxu0 0
        %1058 = vmatpush1.bf16.msra.mxu0 0
        %1059 = vmatprep.subr.bf16.mxu0 0
        %1060 = vmatpush1.bf16.msra.mxu0 0
        %1061 = vmatprep.subr.bf16.mxu0 0
        %1062 = vmatpush1.bf16.msra.mxu0 0
        %1063 = vmatprep.subr.bf16.mxu0 0
        %1064 = vmatpush1.bf16.msra.mxu0 0
        %1065 = vmatprep.subr.bf16.mxu0 0
        %1066 = vmatpush1.bf16.msra.mxu0 0
        %1067 = vmatprep.subr.bf16.mxu0 0
        %1068 = vmatpush1.bf16.msra.mxu0 0
        %1069 = vmatprep.subr.bf16.mxu0 0
        %1070 = vmatpush1.bf16.msra.mxu0 0
        %1071 = vmatprep.subr.bf16.mxu0 0
        %1072 = vmatpush1.bf16.msra.mxu0 0
        %1073 = vmatprep.mubr.bf16.mxu0 0
        %1074 = vmatmul.mubr.bf16.gmra.mrb[0].mxu0 %v992
        %v1075 = vpop.f32.mrb[0].mxu0
        %v1076 = vadd.f32 0.0, %v1075
        %v1077 = vpop.f32.mrb[0].mxu0
        %v1078 = vpop.f32.mrb[0].mxu0
        %v1079 = vadd.f32 0.0, %v1078
        %v1080 = vpop.f32.mrb[0].mxu0
        %1081 = vdwg.mxu0
        %v1082 = vpack.c.bf16 %v1079, %v1076
        %1083 = vmatprep.subr.bf16.mxu0 0
        %1084 = vmatpush1.bf16.xpose.msra.mxu0 %v974
        %1085 = vmatprep.subr.bf16.mxu0 0
        %1086 = vmatpush1.bf16.xpose.msra.mxu0 %v975
        %1087 = vmatprep.subr.bf16.mxu0 0
        %1088 = vmatpush1.bf16.xpose.msra.mxu0 %v976
        %1089 = vmatprep.subr.bf16.mxu0 0
        %1090 = vmatpush1.bf16.xpose.msra.mxu0 %v977
        %1091 = vmatprep.subr.bf16.mxu0 0
        %1092 = vmatpush1.bf16.xpose.msra.mxu0 %v978
        %1093 = vmatprep.subr.bf16.mxu0 0
        %1094 = vmatpush1.bf16.xpose.msra.mxu0 %v979
        %1095 = vmatprep.subr.bf16.mxu0 0
        %1096 = vmatpush1.bf16.xpose.msra.mxu0 %v980
        %1097 = vmatprep.subr.bf16.mxu0 0
        %1098 = vmatpush1.bf16.xpose.msra.mxu0 %v981
        %1099 = vmatprep.subr.bf16.mxu0 0
        %1100 = vmatpush1.bf16.xpose.msra.mxu0 0
        %1101 = vmatprep.subr.bf16.mxu0 0
        %1102 = vmatpush1.bf16.xpose.msra.mxu0 0
        %1103 = vmatprep.subr.bf16.mxu0 0
        %1104 = vmatpush1.bf16.xpose.msra.mxu0 0
        %1105 = vmatprep.subr.bf16.mxu0 0
        %1106 = vmatpush1.bf16.xpose.msra.mxu0 0
        %1107 = vmatprep.subr.bf16.mxu0 0
        %1108 = vmatpush1.bf16.xpose.msra.mxu0 0
        %1109 = vmatprep.subr.bf16.mxu0 0
        %1110 = vmatpush1.bf16.xpose.msra.mxu0 0
        %1111 = vmatprep.subr.bf16.mxu0 0
        %1112 = vmatpush1.bf16.xpose.msra.mxu0 0
        %1113 = vmatprep.subr.bf16.mxu0 0
        %1114 = vmatpush1.bf16.xpose.msra.mxu0 0
        %1115 = vmatprep.mubr.bf16.mxu0 0
        %1116 = vmatmul.mubr.bf16.gmra.mrb[0].mxu0 %v1082
        %v1117 = vpop.f32.mrb[0].mxu0
        %v1118 = vadd.f32 0.0, %v1117
        %v1119 = vpop.f32.mrb[0].mxu0
        %v1120 = vpop.f32.mrb[0].mxu0
        %v1121 = vadd.f32 0.0, %v1120
        %v1122 = vpop.f32.mrb[0].mxu0
        %1123 = vdwg.mxu0
        %v1124 = vmul.f32 %v1118, 0.088388346
        %v1125 = vmul.f32 %v1121, 0.088388346
        %1126 = vmax.xlane.f32.xlu0 %v1124
        %v1127 = vpop.xlane.xlu0 %1126
        %1128 = vmax.xlane.f32.xlu0 %v1125
        %v1129 = vpop.xlane.xlu0 %1128
        %v1130 = vsub.f32 %v1124, %v1127
        %v1131 = vsub.f32 %v1125, %v1129
        %v1132 = vmul.f32 %v1130, 1.442695
        %v1133 = vpow.pop %v1132
        %v1134 = vmul.f32 %v1131, 1.442695
        %v1135 = vpow.pop %v1134
        %1136 = vadd.xlane.f32.xlu0 %v1133
        %v1137 = vpop.xlane.xlu0 %1136
        %1138 = vadd.xlane.f32.xlu0 %v1135
        %v1139 = vpop.xlane.xlu0 %1138
        %v1140 = vrcp.pop %v1137
        %v1141 = vrcp.pop %v1139
        %v1142 = vmul.f32 %v1133, %v1140
        %v1143 = vmul.f32 %v1135, %v1141
        %v1144 = vpack.c.bf16 %v1143, %v1142
        %1145 = vmatprep.subr.bf16.mxu0 0
        %1146 = vmatpush1.bf16.msra.mxu0 %v982
        %1147 = vmatprep.subr.bf16.mxu0 0
        %1148 = vmatpush1.bf16.msra.mxu0 %v983
        %1149 = vmatprep.subr.bf16.mxu0 0
        %1150 = vmatpush1.bf16.msra.mxu0 %v984
        %1151 = vmatprep.subr.bf16.mxu0 0
        %1152 = vmatpush1.bf16.msra.mxu0 %v985
        %1153 = vmatprep.subr.bf16.mxu0 0
        %1154 = vmatpush1.bf16.msra.mxu0 %v986
        %1155 = vmatprep.subr.bf16.mxu0 0
        %1156 = vmatpush1.bf16.msra.mxu0 %v987
        %1157 = vmatprep.subr.bf16.mxu0 0
        %1158 = vmatpush1.bf16.msra.mxu0 %v988
        %1159 = vmatprep.subr.bf16.mxu0 0
        %1160 = vmatpush1.bf16.msra.mxu0 %v989
        %1161 = vmatprep.subr.bf16.mxu0 0
        %1162 = vmatpush1.bf16.msra.mxu0 0
        %1163 = vmatprep.subr.bf16.mxu0 0
        %1164 = vmatpush1.bf16.msra.mxu0 0
        %1165 = vmatprep.subr.bf16.mxu0 0
        %1166 = vmatpush1.bf16.msra.mxu0 0
        %1167 = vmatprep.subr.bf16.mxu0 0
        %1168 = vmatpush1.bf16.msra.mxu0 0
        %1169 = vmatprep.subr.bf16.mxu0 0
        %1170 = vmatpush1.bf16.msra.mxu0 0
        %1171 = vmatprep.subr.bf16.mxu0 0
        %1172 = vmatpush1.bf16.msra.mxu0 0
        %1173 = vmatprep.subr.bf16.mxu0 0
        %1174 = vmatpush1.bf16.msra.mxu0 0
        %1175 = vmatprep.subr.bf16.mxu0 0
        %1176 = vmatpush1.bf16.msra.mxu0 0
        %1177 = vmatprep.mubr.bf16.mxu0 0
        %1178 = vmatmul.mubr.bf16.gmra.mrb[0].mxu0 %v1144
        %v1179 = vpop.f32.mrb[0].mxu0
        %v1180 = vadd.f32 0.0, %v1179
        %v1181 = vpop.f32.mrb[0].mxu0
        %v1182 = vpop.f32.mrb[0].mxu0
        %v1183 = vadd.f32 0.0, %v1182
        %v1184 = vpop.f32.mrb[0].mxu0
        %1185 = vdwg.mxu0
        %v1186 = vpack.c.bf16 %v1183, %v1180
        %v1203 = vunpack.c.l.b16 %v958
        %v1204 = vunpack.c.l.b16 %v959
        %v1205 = vunpack.c.l.b16 %v960
        %v1206 = vunpack.c.l.b16 %v961
        %v1207 = vunpack.c.l.b16 %v962
        %v1208 = vunpack.c.l.b16 %v963
        %v1209 = vunpack.c.l.b16 %v964
        %v1210 = vunpack.c.l.b16 %v965
        %v1211 = vunpack.c.l.b16 %v966
        %v1212 = vunpack.c.l.b16 %v967
        %v1213 = vunpack.c.l.b16 %v968
        %v1214 = vunpack.c.l.b16 %v969
        %v1215 = vunpack.c.l.b16 %v970
        %v1216 = vunpack.c.l.b16 %v971
        %v1217 = vunpack.c.l.b16 %v972
        %v1218 = vunpack.c.l.b16 %v973
        %v1219 = vpack.c.b16 %v1204, %v1203
        %v1220 = vpack.c.b16 %v1206, %v1205
        %v1221 = vpack.c.b16 %v1208, %v1207
        %v1222 = vpack.c.b16 %v1210, %v1209
        %v1223 = vpack.c.b16 %v1212, %v1211
        %v1224 = vpack.c.b16 %v1214, %v1213
        %v1225 = vpack.c.b16 %v1216, %v1215
        %v1226 = vpack.c.b16 %v1218, %v1217
        %1235 = vmatprep.subr.bf16.mxu0 0
        %1236 = vmatpush1.bf16.msra.mxu0 %v1219
        %1237 = vmatprep.subr.bf16.mxu0 0
        %1238 = vmatpush1.bf16.msra.mxu0 %v1220
        %1239 = vmatprep.subr.bf16.mxu0 0
        %1240 = vmatpush1.bf16.msra.mxu0 %v1221
        %1241 = vmatprep.subr.bf16.mxu0 0
        %1242 = vmatpush1.bf16.msra.mxu0 %v1222
        %1243 = vmatprep.subr.bf16.mxu0 0
        %1244 = vmatpush1.bf16.msra.mxu0 %v1223
        %1245 = vmatprep.subr.bf16.mxu0 0
        %1246 = vmatpush1.bf16.msra.mxu0 %v1224
        %1247 = vmatprep.subr.bf16.mxu0 0
        %1248 = vmatpush1.bf16.msra.mxu0 %v1225
        %1249 = vmatprep.subr.bf16.mxu0 0
        %1250 = vmatpush1.bf16.msra.mxu0 %v1226
        %1251 = vmatprep.subr.bf16.mxu0 0
        %1252 = vmatpush1.bf16.msra.mxu0 0
        %1253 = vmatprep.subr.bf16.mxu0 0
        %1254 = vmatpush1.bf16.msra.mxu0 0
        %1255 = vmatprep.subr.bf16.mxu0 0
        %1256 = vmatpush1.bf16.msra.mxu0 0
        %1257 = vmatprep.subr.bf16.mxu0 0
        %1258 = vmatpush1.bf16.msra.mxu0 0
        %1259 = vmatprep.subr.bf16.mxu0 0
        %1260 = vmatpush1.bf16.msra.mxu0 0
        %1261 = vmatprep.subr.bf16.mxu0 0
        %1262 = vmatpush1.bf16.msra.mxu0 0
        %1263 = vmatprep.subr.bf16.mxu0 0
        %1264 = vmatpush1.bf16.msra.mxu0 0
        %1265 = vmatprep.subr.bf16.mxu0 0
        %1266 = vmatpush1.bf16.msra.mxu0 0
        %1267 = vmatprep.mubr.bf16.mxu0 0
        %1268 = vmatmul.mubr.bf16.gmra.mrb[0].mxu0 %v1186
        %v1269 = vpop.f32.mrb[0].mxu0
        %v1270 = vadd.f32 %v936, %v1269
        %v1271 = vpop.f32.mrb[0].mxu0
        %v1272 = vpop.f32.mrb[0].mxu0
        %v1273 = vadd.f32 %v937, %v1272
        %v1274 = vpop.f32.mrb[0].mxu0
        %1275 = vdwg.mxu0
        %v1276 = vadd.f32 %v1270, %v940
        %v1277 = vadd.f32 %v1273, %v941
        %v1278 = vpack.c.bf16 %v1277, %v1276
        %1279 = vmatprep.subr.bf16.mxu0 0
        %1280 = vmatpush1.bf16.msra.mxu0 %v1025
        %1281 = vmatprep.subr.bf16.mxu0 0
        %1282 = vmatpush1.bf16.msra.mxu0 %v1026
        %1283 = vmatprep.subr.bf16.mxu0 0
        %1284 = vmatpush1.bf16.msra.mxu0 %v1027
        %1285 = vmatprep.subr.bf16.mxu0 0
        %1286 = vmatpush1.bf16.msra.mxu0 %v1028
        %1287 = vmatprep.subr.bf16.mxu0 0
        %1288 = vmatpush1.bf16.msra.mxu0 %v1029
        %1289 = vmatprep.subr.bf16.mxu0 0
        %1290 = vmatpush1.bf16.msra.mxu0 %v1030
        %1291 = vmatprep.subr.bf16.mxu0 0
        %1292 = vmatpush1.bf16.msra.mxu0 %v1031
        %1293 = vmatprep.subr.bf16.mxu0 0
        %1294 = vmatpush1.bf16.msra.mxu0 %v1032
        %1295 = vmatprep.subr.bf16.mxu0 0
        %1296 = vmatpush1.bf16.msra.mxu0 0
        %1297 = vmatprep.subr.bf16.mxu0 0
        %1298 = vmatpush1.bf16.msra.mxu0 0
        %1299 = vmatprep.subr.bf16.mxu0 0
        %1300 = vmatpush1.bf16.msra.mxu0 0
        %1301 = vmatprep.subr.bf16.mxu0 0
        %1302 = vmatpush1.bf16.msra.mxu0 0
        %1303 = vmatprep.subr.bf16.mxu0 0
        %1304 = vmatpush1.bf16.msra.mxu0 0
        %1305 = vmatprep.subr.bf16.mxu0 0
        %1306 = vmatpush1.bf16.msra.mxu0 0
        %1307 = vmatprep.subr.bf16.mxu0 0
        %1308 = vmatpush1.bf16.msra.mxu0 0
        %1309 = vmatprep.subr.bf16.mxu0 0
        %1310 = vmatpush1.bf16.msra.mxu0 0
        %1311 = vmatprep.mubr.bf16.mxu0 0
        %1312 = vmatmul.mubr.bf16.gmra.mrb[0].mxu0 %v1278
        %v1313 = vpop.f32.mrb[0].mxu0
        %v1314 = vadd.f32 0.0, %v1313
        %v1315 = vpop.f32.mrb[0].mxu0
        %v1316 = vpop.f32.mrb[0].mxu0
        %v1317 = vadd.f32 0.0, %v1316
        %v1318 = vpop.f32.mrb[0].mxu0
        %1319 = vdwg.mxu0
        %v1320 = vpack.c.bf16 %v1317, %v1314
        %1321 = vmatprep.subr.bf16.mxu0 0
        %1322 = vmatpush1.bf16.xpose.msra.mxu0 %v974
        %1323 = vmatprep.subr.bf16.mxu0 0
        %1324 = vmatpush1.bf16.xpose.msra.mxu0 %v975
        %1325 = vmatprep.subr.bf16.mxu0 0
        %1326 = vmatpush1.bf16.xpose.msra.mxu0 %v976
        %1327 = vmatprep.subr.bf16.mxu0 0
        %1328 = vmatpush1.bf16.xpose.msra.mxu0 %v977
        %1329 = vmatprep.subr.bf16.mxu0 0
        %1330 = vmatpush1.bf16.xpose.msra.mxu0 %v978
        %1331 = vmatprep.subr.bf16.mxu0 0
        %1332 = vmatpush1.bf16.xpose.msra.mxu0 %v979
        %1333 = vmatprep.subr.bf16.mxu0 0
        %1334 = vmatpush1.bf16.xpose.msra.mxu0 %v980
        %1335 = vmatprep.subr.bf16.mxu0 0
        %1336 = vmatpush1.bf16.xpose.msra.mxu0 %v981
        %1337 = vmatprep.subr.bf16.mxu0 0
        %1338 = vmatpush1.bf16.xpose.msra.mxu0 0
        %1339 = vmatprep.subr.bf16.mxu0 0
        %1340 = vmatpush1.bf16.xpose.msra.mxu0 0
        %1341 = vmatprep.subr.bf16.mxu0 0
        %1342 = vmatpush1.bf16.xpose.msra.mxu0 0
        %1343 = vmatprep.subr.bf16.mxu0 0
        %1344 = vmatpush1.bf16.xpose.msra.mxu0 0
        %1345 = vmatprep.subr.bf16.mxu0 0
        %1346 = vmatpush1.bf16.xpose.msra.mxu0 0
        %1347 = vmatprep.subr.bf16.mxu0 0
        %1348 = vmatpush1.bf16.xpose.msra.mxu0 0
        %1349 = vmatprep.subr.bf16.mxu0 0
        %1350 = vmatpush1.bf16.xpose.msra.mxu0 0
        %1351 = vmatprep.subr.bf16.mxu0 0
        %1352 = vmatpush1.bf16.xpose.msra.mxu0 0
        %1353 = vmatprep.mubr.bf16.mxu0 0
        %1354 = vmatmul.mubr.bf16.gmra.mrb[0].mxu0 %v1320
        %v1355 = vpop.f32.mrb[0].mxu0
        %v1356 = vadd.f32 0.0, %v1355
        %v1357 = vpop.f32.mrb[0].mxu0
        %v1358 = vpop.f32.mrb[0].mxu0
        %v1359 = vadd.f32 0.0, %v1358
        %v1360 = vpop.f32.mrb[0].mxu0
        %1361 = vdwg.mxu0
        %v1362 = vmul.f32 %v1356, 0.088388346
        %v1363 = vmul.f32 %v1359, 0.088388346
        %1364 = vmax.xlane.f32.xlu0 %v1362
        %v1365 = vpop.xlane.xlu0 %1364
        %1366 = vmax.xlane.f32.xlu0 %v1363
        %v1367 = vpop.xlane.xlu0 %1366
        %v1368 = vsub.f32 %v1362, %v1365
        %v1369 = vsub.f32 %v1363, %v1367
        %v1370 = vmul.f32 %v1368, 1.442695
        %v1371 = vpow.pop %v1370
        %v1372 = vmul.f32 %v1369, 1.442695
        %v1373 = vpow.pop %v1372
        %1374 = vadd.xlane.f32.xlu0 %v1371
        %v1375 = vpop.xlane.xlu0 %1374
        %1376 = vadd.xlane.f32.xlu0 %v1373
        %v1377 = vpop.xlane.xlu0 %1376
        %v1378 = vrcp.pop %v1375
        %v1379 = vrcp.pop %v1377
        %v1380 = vmul.f32 %v1371, %v1378
        %v1381 = vmul.f32 %v1373, %v1379
        %v1382 = vpack.c.bf16 %v1381, %v1380
        %1383 = vmatprep.subr.bf16.mxu0 0
        %1384 = vmatpush1.bf16.msra.mxu0 %v982
        %1385 = vmatprep.subr.bf16.mxu0 0
        %1386 = vmatpush1.bf16.msra.mxu0 %v983
        %1387 = vmatprep.subr.bf16.mxu0 0
        %1388 = vmatpush1.bf16.msra.mxu0 %v984
        %1389 = vmatprep.subr.bf16.mxu0 0
        %1390 = vmatpush1.bf16.msra.mxu0 %v985
        %1391 = vmatprep.subr.bf16.mxu0 0
        %1392 = vmatpush1.bf16.msra.mxu0 %v986
        %1393 = vmatprep.subr.bf16.mxu0 0
        %1394 = vmatpush1.bf16.msra.mxu0 %v987
        %1395 = vmatprep.subr.bf16.mxu0 0
        %1396 = vmatpush1.bf16.msra.mxu0 %v988
        %1397 = vmatprep.subr.bf16.mxu0 0
        %1398 = vmatpush1.bf16.msra.mxu0 %v989
        %1399 = vmatprep.subr.bf16.mxu0 0
        %1400 = vmatpush1.bf16.msra.mxu0 0
        %1401 = vmatprep.subr.bf16.mxu0 0
        %1402 = vmatpush1.bf16.msra.mxu0 0
        %1403 = vmatprep.subr.bf16.mxu0 0
        %1404 = vmatpush1.bf16.msra.mxu0 0
        %1405 = vmatprep.subr.bf16.mxu0 0
        %1406 = vmatpush1.bf16.msra.mxu0 0
        %1407 = vmatprep.subr.bf16.mxu0 0
        %1408 = vmatpush1.bf16.msra.mxu0 0
        %1409 = vmatprep.subr.bf16.mxu0 0
        %1410 = vmatpush1.bf16.msra.mxu0 0
        %1411 = vmatprep.subr.bf16.mxu0 0
        %1412 = vmatpush1.bf16.msra.mxu0 0
        %1413 = vmatprep.subr.bf16.mxu0 0
        %1414 = vmatpush1.bf16.msra.mxu0 0
        %1415 = vmatprep.mubr.bf16.mxu0 0
        %1416 = vmatmul.mubr.bf16.gmra.mrb[0].mxu0 %v1382
        %v1417 = vpop.f32.mrb[0].mxu0
        %v1418 = vadd.f32 0.0, %v1417
        %v1419 = vpop.f32.mrb[0].mxu0
        %v1420 = vpop.f32.mrb[0].mxu0
        %v1421 = vadd.f32 0.0, %v1420
        %v1422 = vpop.f32.mrb[0].mxu0
        %1423 = vdwg.mxu0
        %v1424 = vpack.c.bf16 %v1421, %v1418
        %1425 = vmatprep.subr.bf16.mxu0 0
        %1426 = vmatpush1.bf16.msra.mxu0 %v1219
        %1427 = vmatprep.subr.bf16.mxu0 0
        %1428 = vmatpush1.bf16.msra.mxu0 %v1220
        %1429 = vmatprep.subr.bf16.mxu0 0
        %1430 = vmatpush1.bf16.msra.mxu0 %v1221
        %1431 = vmatprep.subr.bf16.mxu0 0
        %1432 = vmatpush1.bf16.msra.mxu0 %v1222
        %1433 = vmatprep.subr.bf16.mxu0 0
        %1434 = vmatpush1.bf16.msra.mxu0 %v1223
        %1435 = vmatprep.subr.bf16.mxu0 0
        %1436 = vmatpush1.bf16.msra.mxu0 %v1224
        %1437 = vmatprep.subr.bf16.mxu0 0
        %1438 = vmatpush1.bf16.msra.mxu0 %v1225
        %1439 = vmatprep.subr.bf16.mxu0 0
        %1440 = vmatpush1.bf16.msra.mxu0 %v1226
        %1441 = vmatprep.subr.bf16.mxu0 0
        %1442 = vmatpush1.bf16.msra.mxu0 0
        %1443 = vmatprep.subr.bf16.mxu0 0
        %1444 = vmatpush1.bf16.msra.mxu0 0
        %1445 = vmatprep.subr.bf16.mxu0 0
        %1446 = vmatpush1.bf16.msra.mxu0 0
        %1447 = vmatprep.subr.bf16.mxu0 0
        %1448 = vmatpush1.bf16.msra.mxu0 0
        %1449 = vmatprep.subr.bf16.mxu0 0
        %1450 = vmatpush1.bf16.msra.mxu0 0
        %1451 = vmatprep.subr.bf16.mxu0 0
        %1452 = vmatpush1.bf16.msra.mxu0 0
        %1453 = vmatprep.subr.bf16.mxu0 0
        %1454 = vmatpush1.bf16.msra.mxu0 0
        %1455 = vmatprep.subr.bf16.mxu0 0
        %1456 = vmatpush1.bf16.msra.mxu0 0
        %1457 = vmatprep.mubr.bf16.mxu0 0
        %1458 = vmatmul.mubr.bf16.gmra.mrb[0].mxu0 %v1424
        %v1459 = vpop.f32.mrb[0].mxu0
        %v1460 = vadd.f32 %v1270, %v1459
        %v1461 = vpop.f32.mrb[0].mxu0
        %v1462 = vpop.f32.mrb[0].mxu0
        %v1463 = vadd.f32 %v1273, %v1462
        %v1464 = vpop.f32.mrb[0].mxu0
        %1465 = vdwg.mxu0
        %1466 = vadd.xlane.f32.xlu0 %v1460
        %v1467 = vpop.xlane.xlu0 %1466
        %1468 = vadd.xlane.f32.xlu0 %v1463
        %v1469 = vpop.xlane.xlu0 %1468
        %v1470 = vmul.f32 %v1467, 0.0078125
        %v1471 = vmul.f32 %v1469, 0.0078125
        %v1472 = vsub.f32 %v1460, %v1470
        %v1473 = vsub.f32 %v1463, %v1471
        %v1474 = vmul.f32 %v1472, %v1472
        %v1475 = vmul.f32 %v1473, %v1473
        %1476 = vadd.xlane.f32.xlu0 %v1474
        %v1477 = vpop.xlane.xlu0 %1476
        %1478 = vadd.xlane.f32.xlu0 %v1475
        %v1479 = vpop.xlane.xlu0 %1478
        %v1480 = vmul.f32 %v1477, 0.0078125
        %v1481 = vmul.f32 %v1479, 0.0078125
        %v1482 = vadd.f32 %v1480, 1e-05
        %v1483 = vadd.f32 %v1481, 1e-05
        %v1484 = vrsqrt.pop %v1482
        %v1485 = vrsqrt.pop %v1483
        %v1486 = vmul.f32 %v1472, %v1484
        %v1487 = vmul.f32 %v1473, %v1485
        %v1488 = vld [vmem:[%s7] sm:$0x1]
        %v1490 = vlaneseq
        %v1491 = vshrl.u32 %v1490, 7
        %v1492 = vsub.s32 0, %v1491
        %v1493 = vrot.slane %v1488, %v1492
        %v1495 = vmul.f32 %v1486, %v1493
        %v1496 = vmul.f32 %v1487, %v1493
        %v1497 = vld [vmem:[%s8] sm:$0x1]
        %v1499 = vlaneseq
        %v1500 = vshrl.u32 %v1499, 7
        %v1501 = vsub.s32 0, %v1500
        %v1502 = vrot.slane %v1497, %v1501
        %v1504 = vadd.f32 %v1495, %v1502
        %v1505 = vadd.f32 %v1496, %v1502
        %1506 = vst [vmem:[%s507] sm:$0xff] %v1504
        %1507 = vst [vmem:[%s507 + $0x8] sm:$0xff] %v1505
        %s1508 = sand.u32 %s261, 1
        %s1509 = scalar_lea.sflag [#allocation6], %s1508
        %s1510 = sand.u32 %s261, 1
        %s1511 = smul.addr %s1510, 16
        %s1512 = scalar_lea.vmem [#allocation16], %s1511
        // Predicated region
        $region89: #{tpu_custom_call.1} parent=55 // pred_check
          %p1513 = pneg %p271
        $region90: #{tpu_custom_call.1} parent=55 // pred_check_branch
          %1515 = sbr.rel (%p1513) target = $region92
        $region91: #{tpu_custom_call.1} parent=55 // pred_region
          %s1516 = smul.u32 2, %s36
          %s1518 = ssub.s32 256, 256
          %1519 = vsyncadd %s1509, %s1518
          %s1520 = smul.addr %s35, 2
          %s1521 = sadd.s32 %s1516, %s1520
          %s1522 = smul.addr %s1521, 128
          %s1523 = scalar_lea.hbm %s9, %s1522
          %s1524 = sshll.u32 %s1512, 4
          %s1525 = int_to_ptr.vmem [resolvable:$true] %s1524
          %1530 = dma.vmem_to_hbm [thread:$0]  %s1525, 256, %s1523, %s1509, 128, 128, 8
        $region92: #{tpu_custom_call.1} parent=55 // pred_fallthru
          _
      $region56: #{tpu_custom_call.1} parent=5 // pred_fallthru
        _
      %p1531 = scmp.le.s32.totalorder 2, %s26
      // Predicated region
      $region93: #{tpu_custom_call.1} parent=5 // pred_check
        %p1532 = pneg %p1531
      $region94: #{tpu_custom_call.1} parent=5 // pred_check_branch
        %1534 = sbr.rel (%p1532) target = $region96
      $region95: #{tpu_custom_call.1} parent=5 // pred_region
        %s1535 = ssub.s32 %s26, 2
        // Predicated region
        $region97: #{tpu_custom_call.1} parent=95 // pred_check
          %p1536 = pneg %p277
        $region98: #{tpu_custom_call.1} parent=95 // pred_check_branch
          %1538 = sbr.rel (%p1536) target = $region100
        $region99: #{tpu_custom_call.1} parent=95 // pred_region
          %s1539 = sand.u32 %s262, 1
          %s1540 = scalar_lea.sflag [#allocation6], %s1539
          %s1541 = sand.u32 %s262, 1
          %s1542 = smul.addr %s1541, 16
          %s1543 = scalar_lea.vmem [#allocation16], %s1542
          %1544 = dma.done %s1540, 256
        $region100: #{tpu_custom_call.1} parent=95 // pred_fallthru
          _
      $region96: #{tpu_custom_call.1} parent=5 // pred_fallthru
        _
    $region6: #{tpu_custom_call.1} parent=1 // loop_footer
      %s30 = sadd.s32 1, %s26
    $region7: #{tpu_custom_call.1} parent=1 // loop_footer_branch
      %25 = sbr.rel target = $region3
    $region8: #{tpu_custom_call.1} parent=1 // loop_exit
      _
    %1545 = vsyncpa [#allocation5], 1
    %s1546 = scalar_lea.sflag [#allocation5], 1
    %1547 = vsyncpa %s1546, 1
    %1548 = vsyncpa [#allocation8], 1
    %s1549 = scalar_lea.sflag [#allocation8], 1
    %1550 = vsyncpa %s1549, 1
    %1551 = vsyncpa [#allocation11], 1
    %1552 = vsyncpa [#allocation14], 1
    %1553 = vsyncpa [#allocation6], 1
    %s1554 = scalar_lea.sflag [#allocation6], 1
    %1555 = vsyncpa %s1554, 1

</llo_original>
